<compile_context>
chip_gen: v7x
topology: tpu7x:2x2x1
jax: 0.10.0
libtpu: 0.0.40
codegen_flags: <defaults>
</compile_context>

<pallas_src>
import functools

import jax
import jax.numpy as jnp
import numpy as np
from jax.experimental import pallas as pl
from jax.experimental.pallas import tpu as pltpu


def _convlstm_kernel(patch_ref, cx_ref, w_ref, hy_ref, cy_ref, *, Ch):
    """One grid step = Bt batch elements folded into the lane dim.

    patch_ref: (KKCP, Bt*HW)  im2col patches; row KKC (== 324) is all-ones
    cx_ref:    (Ch,   Bt*HW)
    w_ref:     (4*Ch, KKCP)   OIHW weight flattened over (I, kH, kW); column
                              KKC carries the bias; remaining columns zero
    hy_ref / cy_ref: (Ch, Bt*HW)
    """
    # Single MXU matmul with f32 accumulation; bias comes in for free via the
    # ones-row / bias-column.  gates: (4*Ch, Bt*HW).
    gates = jnp.dot(w_ref[...], patch_ref[...],
                    preferred_element_type=jnp.float32)

    # torch.split(gates, hidden_channels, dim=1) order: i, f, g, o.
    # Sublane slices at multiples of Ch are free; every operand below is
    # Bt*HW (>= 256) lanes wide -> full VPU/EUP vreg occupancy.
    ingate     = jax.nn.sigmoid(gates[0 * Ch:1 * Ch])
    forgetgate = jax.nn.sigmoid(gates[1 * Ch:2 * Ch])
    cellgate   = jnp.tanh(gates[2 * Ch:3 * Ch])
    outgate    = jax.nn.sigmoid(gates[3 * Ch:4 * Ch])

    cx = cx_ref[...]                              # (Ch, Bt*HW), f32
    cy = forgetgate * cx + ingate * cellgate
    hy = outgate * jnp.tanh(cy)
    cy_ref[...] = cy                              # lane-dense stores
    hy_ref[...] = hy


def _pick_batch_tile(B, HW, Ch, KKCP, mxu_itemsize):
    """Largest batch tile Bt that (a) divides B, (b) keeps the double-buffered
    working set comfortably under the 32 MiB scoped-VMEM default (v7x-safe;
    larger tiles on v5e/v6e give diminishing returns at these shapes),
    (c) leaves >= 2 grid steps when B >= 2 so the "parallel" axis can shard
    across both v7x TensorCores, and (d) keeps the lane block a multiple of
    128 (or the full lane extent)."""
    per_elem = HW * (KKCP * mxu_itemsize + 3 * Ch * 4)  # patches + cx + hy + cy
    budget = 12 * 1024 * 1024                           # headroom: gates, W, misc
    cap = max(1, budget // (2 * per_elem))              # x2 for double-buffering
    best = 1
    for bt in range(1, B + 1):
        if B % bt or bt > cap:
            continue
        if (bt * HW) % 128 != 0 and bt != B:
            continue
        if B // bt >= 2 or B == 1:
            best = bt
    return best


def conv_lstm_cell(x, hx, cx, weight, bias, kernel_size, *,
                   mxu_dtype=jnp.bfloat16):
    """ConvLSTMCell.forward.  x/hx/cx are NCHW; weight is OIHW (PyTorch).

    mxu_dtype controls only the MXU inputs (patches / weights); accumulation
    and all LSTM elementwise math stay f32.  The bf16 default deviates ~1e-2
    from the pure-f32 reference; pass mxu_dtype=jnp.float32 for exactness.
    """
    B, Cin, H, W = x.shape
    Ch = hx.shape[1]
    K = kernel_size
    if K % 2 != 1:
        # PyTorch Conv2d(padding=K//2) changes the output spatial shape for
        # even K; this kernel only reproduces the odd-K ("same") case.
        raise NotImplementedError("conv_lstm_cell requires odd kernel_size")
    p = K // 2
    C = Cin + Ch
    HW = H * W
    KKC = C * K * K
    # Contraction dim padded to a lane-aligned size; the +1 row is the bias.
    KKCP = ((KKC + 1 + 127) // 128) * 128
    mxu_itemsize = int(np.dtype(mxu_dtype).itemsize)

    Bt = _pick_batch_tile(B, HW, Ch, KKCP, mxu_itemsize)
    num_blocks = B // Bt
    lanes = Bt * HW

    # --- wrapper glue (fused by XLA under jit): channel concat, spatial
    # zero-pad, im2col.  Row order (c, ky, kx) matches the OIHW flatten; lane
    # order is (b, y, x) so the batch folds into the lane dimension.
    combined = jnp.concatenate(
        [x.astype(jnp.float32), hx.astype(jnp.float32)], axis=1)   # (B,C,H,W)
    padded = jnp.pad(combined, ((0, 0), (0, 0), (p, p), (p, p)))
    taps = [padded[:, :, dy:dy + H, dx:dx + W]
            for dy in range(K) for dx in range(K)]
    patches = jnp.stack(taps, axis=2)                       # (B, C, K*K, H, W)
    patches = patches.transpose(1, 2, 0, 3, 4).reshape(KKC, B * HW)
    patches = jnp.concatenate(
        [patches,
         jnp.ones((1, B * HW), patches.dtype),              # bias (ones) row
         jnp.zeros((KKCP - KKC - 1, B * HW), patches.dtype)],  # alignment pad
        axis=0).astype(mxu_dtype)

    w2 = jnp.concatenate(
        [weight.reshape(4 * Ch, KKC).astype(jnp.float32),   # pure OIHW reshape
         bias.reshape(4 * Ch, 1).astype(jnp.float32),       # folded bias column
         jnp.zeros((4 * Ch, KKCP - KKC - 1), jnp.float32)],
        axis=1).astype(mxu_dtype)

    cx2 = cx.astype(jnp.float32).transpose(1, 0, 2, 3).reshape(Ch, B * HW)

    cost = pl.CostEstimate(
        flops=2 * (4 * Ch) * KKCP * B * HW,
        transcendentals=5 * Ch * B * HW,                    # 3 sigmoid + 2 tanh
        bytes_accessed=(KKCP * B * HW * mxu_itemsize        # patches
                        + 4 * Ch * KKCP * mxu_itemsize      # weights
                        + 3 * Ch * B * HW * 4))             # cx + hy + cy

    kernel = functools.partial(_convlstm_kernel, Ch=Ch)
    hy_f, cy_f = pl.pallas_call(
        kernel,
        grid=(num_blocks,),
        in_specs=[
            pl.BlockSpec((KKCP, lanes), lambda g: (0, g)),
            pl.BlockSpec((Ch, lanes), lambda g: (0, g)),
            # Constant block index -> weights stay resident in VMEM across
            # grid steps (no per-step re-DMA; weight pushed to the MXU once).
            pl.BlockSpec((4 * Ch, KKCP), lambda g: (0, 0)),
        ],
        out_specs=[
            pl.BlockSpec((Ch, lanes), lambda g: (0, g)),
            pl.BlockSpec((Ch, lanes), lambda g: (0, g)),
        ],
        out_shape=[
            jax.ShapeDtypeStruct((Ch, B * HW), jnp.float32),
            jax.ShapeDtypeStruct((Ch, B * HW), jnp.float32),
        ],
        compiler_params=pltpu.CompilerParams(
            dimension_semantics=("parallel",)),
        cost_estimate=cost,
    )(patches, cx2, w2)

    # TODO(synk): for the time-unrolled ConvLSTM workload, fuse the time loop
    # into a single pallas_call (grid over T marked "arbitrary", h/c and W
    # resident in VMEM scratch) and build the im2col in-kernel to remove the
    # 9x patch HBM amplification; a single cell step (this module's forward)
    # cannot exploit that.
    hy = hy_f.reshape(Ch, B, H, W).transpose(1, 0, 2, 3)
    cy = cy_f.reshape(Ch, B, H, W).transpose(1, 0, 2, 3)
    return hy, cy


def conv_lstm_cell_ref(x, hx, cx, weight, bias, kernel_size):
    """Pure-JAX reference matching the PyTorch module exactly (f32)."""
    p = kernel_size // 2
    combined = jnp.concatenate([x, hx], axis=1)
    gates = jax.lax.conv_general_dilated(
        combined, weight, window_strides=(1, 1), padding=((p, p), (p, p)),
        dimension_numbers=("NCHW", "OIHW", "NCHW"))
    gates = gates + bias[None, :, None, None]
    i, f, g, o = jnp.split(gates, 4, axis=1)
    i = jax.nn.sigmoid(i)
    f = jax.nn.sigmoid(f)
    g = jnp.tanh(g)
    o = jax.nn.sigmoid(o)
    cy = f * cx + i * g
    hy = o * jnp.tanh(cy)
    return hy, cy


if __name__ == "__main__":
    # Small shapes consistent with the module: batch=2, in_channels=4,
    # hidden_channels=32, spatial 16x16, kernel_size=3.
    B, Cin, Ch, H, W, K = 2, 4, 32, 16, 16, 3

    key = jax.random.PRNGKey(0)
    kx, kh, kc, kw, kb = jax.random.split(key, 5)

    x = jax.random.normal(kx, (B, Cin, H, W), dtype=jnp.float32)
    hx = jax.random.normal(kh, (B, Ch, H, W), dtype=jnp.float32)
    cx = jax.random.normal(kc, (B, Ch, H, W), dtype=jnp.float32)

    # Deterministic parameter init mimicking nn.Conv2d's default (uniform
    # +/- 1/sqrt(fan_in)); weight in PyTorch OIHW layout.
    fan_in = (Cin + Ch) * K * K
    bound = 1.0 / np.sqrt(fan_in)
    weight = jax.random.uniform(kw, (4 * Ch, Cin + Ch, K, K),
                                minval=-bound, maxval=bound, dtype=jnp.float32)
    bias = jax.random.uniform(kb, (4 * Ch,),
                              minval=-bound, maxval=bound, dtype=jnp.float32)

    hy_ref, cy_ref = conv_lstm_cell_ref(x, hx, cx, weight, bias, K)

    # Exact-structure check: f32 MXU path must match the reference tightly.
    cell_f32 = jax.jit(functools.partial(conv_lstm_cell, kernel_size=K,
                                         mxu_dtype=jnp.float32))
    hy32, cy32 = cell_f32(x, hx, cx, weight, bias)
    jax.block_until_ready((hy32, cy32))
    np.testing.assert_allclose(np.asarray(hy32), np.asarray(hy_ref),
                               rtol=2e-3, atol=2e-3)
    np.testing.assert_allclose(np.asarray(cy32), np.asarray(cy_ref),
                               rtol=2e-3, atol=2e-3)

    # Default path: bf16 MXU inputs, f32 accumulation + elementwise math.
    cell = jax.jit(functools.partial(conv_lstm_cell, kernel_size=K))
    hy, cy = cell(x, hx, cx, weight, bias)
    jax.block_until_ready((hy, cy))
    np.testing.assert_allclose(np.asarray(hy), np.asarray(hy_ref),
                               rtol=2e-2, atol=2e-2)
    np.testing.assert_allclose(np.asarray(cy), np.asarray(cy_ref),
                               rtol=2e-2, atol=2e-2)

    print("KERNEL_OK")
</pallas_src>

<mosaic_0001>
module attributes {stable_mosaic.version = 11 : i64} {
  func.func @_convlstm_kernel(%arg0: i32, %arg1: memref<384x256xf32, #tpu.memory_space<vmem>>, %arg2: memref<32x256xf32, #tpu.memory_space<vmem>>, %arg3: memref<128x384xf32, #tpu.memory_space<vmem>>, %arg4: memref<32x256xf32, #tpu.memory_space<vmem>>, %arg5: memref<32x256xf32, #tpu.memory_space<vmem>>) attributes {dimension_semantics = [#tpu.dimension_semantics<parallel>], iteration_bounds = array<i64: 2>, scalar_prefetch = 0 : i64, scratch_operands = 0 : i64, tpu.core_type = #tpu.core_type<tc>, window_params = [{transform_indices = @transform_0, window_bounds = array<i64: 384, 256>}, {transform_indices = @transform_1, window_bounds = array<i64: 32, 256>}, {pipeline_mode = #tpu.pipeline_mode<synchronous>, transform_indices = @transform_2, window_bounds = array<i64: 128, 384>}, {transform_indices = @transform_3, window_bounds = array<i64: 32, 256>}, {transform_indices = @transform_4, window_bounds = array<i64: 32, 256>}]} {
    %c0 = arith.constant 0 : index
    %c0_0 = arith.constant 0 : index
    %0 = vector.load %arg3[%c0, %c0_0] : memref<128x384xf32, #tpu.memory_space<vmem>>, vector<128x384xf32>
    %c0_1 = arith.constant 0 : index
    %c0_2 = arith.constant 0 : index
    %1 = vector.load %arg1[%c0_1, %c0_2] : memref<384x256xf32, #tpu.memory_space<vmem>>, vector<384x256xf32>
    %cst = arith.constant dense<0.000000e+00> : vector<128x256xf32>
    %2 = tpu.matmul %0, %1, %cst {dimension_numbers = #tpu.dot_dimension_numbers<[1], [0], [0], [1], [0, 0, 1, 1], [], []>} : vector<128x384xf32>, vector<384x256xf32>, vector<128x256xf32> -> vector<128x256xf32>
    %3 = vector.extract_strided_slice %2 {offsets = [0, 0], sizes = [32, 256], strides = [1, 1]} : vector<128x256xf32> to vector<32x256xf32>
    %4 = arith.negf %3 : vector<32x256xf32>
    %5 = math.exp %4 : vector<32x256xf32>
    %cst_3 = arith.constant 1.000000e+00 : f32
    %6 = vector.broadcast %cst_3 : f32 to vector<32x256xf32>
    %7 = arith.addf %6, %5 : vector<32x256xf32>
    %8 = arith.divf %6, %7 : vector<32x256xf32>
    %9 = vector.extract_strided_slice %2 {offsets = [32, 0], sizes = [32, 256], strides = [1, 1]} : vector<128x256xf32> to vector<32x256xf32>
    %10 = arith.negf %9 : vector<32x256xf32>
    %11 = math.exp %10 : vector<32x256xf32>
    %cst_4 = arith.constant 1.000000e+00 : f32
    %12 = vector.broadcast %cst_4 : f32 to vector<32x256xf32>
    %13 = arith.addf %12, %11 : vector<32x256xf32>
    %14 = arith.divf %12, %13 : vector<32x256xf32>
    %15 = vector.extract_strided_slice %2 {offsets = [64, 0], sizes = [32, 256], strides = [1, 1]} : vector<128x256xf32> to vector<32x256xf32>
    %16 = math.tanh %15 : vector<32x256xf32>
    %17 = vector.extract_strided_slice %2 {offsets = [96, 0], sizes = [32, 256], strides = [1, 1]} : vector<128x256xf32> to vector<32x256xf32>
    %18 = arith.negf %17 : vector<32x256xf32>
    %19 = math.exp %18 : vector<32x256xf32>
    %cst_5 = arith.constant 1.000000e+00 : f32
    %20 = vector.broadcast %cst_5 : f32 to vector<32x256xf32>
    %21 = arith.addf %20, %19 : vector<32x256xf32>
    %22 = arith.divf %20, %21 : vector<32x256xf32>
    %c0_6 = arith.constant 0 : index
    %c0_7 = arith.constant 0 : index
    %23 = vector.load %arg2[%c0_6, %c0_7] : memref<32x256xf32, #tpu.memory_space<vmem>>, vector<32x256xf32>
    %24 = arith.mulf %14, %23 : vector<32x256xf32>
    %25 = arith.mulf %8, %16 : vector<32x256xf32>
    %26 = arith.addf %24, %25 : vector<32x256xf32>
    %27 = math.tanh %26 : vector<32x256xf32>
    %28 = arith.mulf %22, %27 : vector<32x256xf32>
    %c0_8 = arith.constant 0 : index
    %c0_9 = arith.constant 0 : index
    %29 = vector.load %arg5[%c0_8, %c0_9] : memref<32x256xf32, #tpu.memory_space<vmem>>, vector<32x256xf32>
    tpu.vector_store %arg5[%c0_8, %c0_9], %26 {strides = array<i32>} : memref<32x256xf32, #tpu.memory_space<vmem>>, vector<32x256xf32>,
    %c0_10 = arith.constant 0 : index
    %c0_11 = arith.constant 0 : index
    %30 = vector.load %arg4[%c0_10, %c0_11] : memref<32x256xf32, #tpu.memory_space<vmem>>, vector<32x256xf32>
    tpu.vector_store %arg4[%c0_10, %c0_11], %28 {strides = array<i32>} : memref<32x256xf32, #tpu.memory_space<vmem>>, vector<32x256xf32>,
    return
  }
  func.func @transform_0(%arg0: i32) -> (i32, i32) {
    %c0_i32 = arith.constant 0 : i32
    %c0_i32_0 = arith.constant 0 : i32
    return %c0_i32, %arg0 : i32, i32
  }
  func.func @transform_1(%arg0: i32) -> (i32, i32) {
    %c0_i32 = arith.constant 0 : i32
    %c0_i32_0 = arith.constant 0 : i32
    return %c0_i32, %arg0 : i32, i32
  }
  func.func @transform_2(%arg0: i32) -> (i32, i32) {
    %c0_i32 = arith.constant 0 : i32
    %c0_i32_0 = arith.constant 0 : i32
    %c0_i32_1 = arith.constant 0 : i32
    return %c0_i32, %c0_i32_0 : i32, i32
  }
  func.func @transform_3(%arg0: i32) -> (i32, i32) {
    %c0_i32 = arith.constant 0 : i32
    %c0_i32_0 = arith.constant 0 : i32
    return %c0_i32, %arg0 : i32, i32
  }
  func.func @transform_4(%arg0: i32) -> (i32, i32) {
    %c0_i32 = arith.constant 0 : i32
    %c0_i32_0 = arith.constant 0 : i32
    return %c0_i32, %arg0 : i32, i32
  }
}

</mosaic_0001>

<llo_original>
// kernel: conv_lstm_cell.1
$region0: #{conv_lstm_cell.1}
  #allocation0 [shape = 'u32[]', space=smem, size = 0x4, offset = 0x4, fixed_abs, tag = 'smem constant byte address 0x4 - core index']
  #allocation1 [shape = 'u32[144,128]{1,0:T(1,128)}', space=vmem, size = 0x12000, scoped, tag = 'internal scratch']
  %s0 = inlined_call_operand.vmem [shape: f32[384,512], index: 0, kind: input, shape index: {}]
  %s1 = inlined_call_operand.vmem [shape: f32[32,512], index: 1, kind: input, shape index: {}]
  %s2 = inlined_call_operand.vmem [shape: f32[128,384], index: 2, kind: input, shape index: {}]
  %s3 = inlined_call_operand.vmem [shape: f32[32,512], index: 3, kind: output, shape index: {0}]
  %s4 = inlined_call_operand.vmem [shape: f32[32,512], index: 4, kind: output, shape index: {1}]
  %5 = xla_tuple %s3, %s4
  %s6 = sld [smem:[#allocation0]]
  $region137: #{conv_lstm_cell.1} parent=0
    _
  %s8 = ssub.s32 1, %s6
  %s9 = scalar_select 0, %s8, %s6
  $region1: #{conv_lstm_cell.1} parent=0
    #allocation2 [shape = 'u8[786432]{0}', space=vmem, size = 0xc0000, scoped, tag = 'input window, operand 0']
    #allocation3 [shape = 'u8[65536]{0}', space=vmem, size = 0x10000, scoped, tag = 'input window, operand 1']
    #allocation4 [shape = 'u8[65536]{0}', space=vmem, size = 0x10000, scoped, tag = 'output window, operand 0']
    #allocation5 [shape = 'u8[65536]{0}', space=vmem, size = 0x10000, scoped, tag = 'output window, operand 1']
    loop: start=0, step=1, limit=4
    $region2: #{conv_lstm_cell.1} parent=1 // loop_pre_header
      _
    $region3: #{conv_lstm_cell.1} parent=1 // loop_header
      %s11 = sphi 0, %s15
      %p12 = scmp.ge.s32.totalorder %s11, 4
      %s21 = sphi 0, %s23
      %s24 = sphi 0, %s21
      %s25 = sphi 0, %s24
      %s41 = sphi 0, %s25
      %s47 = sphi 0, %s49
      %s50 = sphi 0, %s47
      %s51 = sphi 0, %s50
      %s67 = sphi 0, %s51
      %s71 = sphi 0, %s71
      %s73 = sphi 0, %s71
      %s74 = sphi 0, %s73
      %s88 = sphi 0, %s74
      %s94 = sphi 0, %s96
      %s97 = sphi 0, %s94
      %s98 = sphi 0, %s97
      %s114 = sphi 0, %s98
      %s120 = sphi 0, %s122
      %s123 = sphi 0, %s120
      %s124 = sphi 0, %s123
      %s140 = sphi 0, %s124
    $region4: #{conv_lstm_cell.1} parent=1 // loop_header_branch
      %14 = sbr.rel (%p12) target = $region8
    $region5: #{conv_lstm_cell.1} parent=1 // loop_body
      %s16 = ssub.s32 %s11, 1
      %s17 = ssub.s32 %s11, 2
      %s18 = sadd.s32 %s11, 1
      %s19 = ssub.s32 %s11, %s18
      %p20 = scmp.eq.s32.totalorder %s19, 0
      %s22 = sadd.s32 %s21, 1
      %s23 = scalar_select %p20, %s21, %s22
      %p26 = pneg %p20
      %p27 = scmp.eq.s32.totalorder %s11, 1
      %p28 = por %p26, %p27
      %p29 = scmp.ne.s32.totalorder %s21, %s24
      %p30 = scmp.eq.s32.totalorder %s11, 0
      %p31 = por %p29, %p30
      %p32 = scmp.ne.s32.totalorder %s21, %s24
      %p33 = scmp.eq.s32.totalorder %s16, 1
      %p34 = por %p32, %p33
      %p35 = scmp.ne.s32.totalorder %s24, %s25
      %p36 = scmp.eq.s32.totalorder %s16, 0
      %p37 = por %p35, %p36
      %p38 = scmp.ne.s32.totalorder %s24, %s25
      %p39 = scmp.eq.s32.totalorder %s17, 1
      %p40 = por %p38, %p39
      %p42 = scmp.ne.s32.totalorder %s25, %s41
      %p43 = scmp.eq.s32.totalorder %s17, 0
      %p44 = por %p42, %p43
      %s45 = ssub.s32 %s11, %s18
      %p46 = scmp.eq.s32.totalorder %s45, 0
      %s48 = sadd.s32 %s47, 1
      %s49 = scalar_select %p46, %s47, %s48
      %p52 = pneg %p46
      %p53 = scmp.eq.s32.totalorder %s11, 1
      %p54 = por %p52, %p53
      %p55 = scmp.ne.s32.totalorder %s47, %s50
      %p56 = scmp.eq.s32.totalorder %s11, 0
      %p57 = por %p55, %p56
      %p58 = scmp.ne.s32.totalorder %s47, %s50
      %p59 = scmp.eq.s32.totalorder %s16, 1
      %p60 = por %p58, %p59
      %p61 = scmp.ne.s32.totalorder %s50, %s51
      %p62 = scmp.eq.s32.totalorder %s16, 0
      %p63 = por %p61, %p62
      %p64 = scmp.ne.s32.totalorder %s50, %s51
      %p65 = scmp.eq.s32.totalorder %s17, 1
      %p66 = por %p64, %p65
      %p68 = scmp.ne.s32.totalorder %s51, %s67
      %p69 = scmp.eq.s32.totalorder %s17, 0
      %p70 = por %p68, %p69
      %s72 = sadd.s32 %s71, 1
      %p75 = scmp.eq.s32.totalorder %s11, 1
      %p76 = scmp.ne.s32.totalorder %s71, %s73
      %p77 = scmp.eq.s32.totalorder %s11, 0
      %p78 = por %p76, %p77
      %p79 = scmp.ne.s32.totalorder %s71, %s73
      %p80 = scmp.eq.s32.totalorder %s16, 1
      %p81 = por %p79, %p80
      %p82 = scmp.ne.s32.totalorder %s73, %s74
      %p83 = scmp.eq.s32.totalorder %s16, 0
      %p84 = por %p82, %p83
      %p85 = scmp.ne.s32.totalorder %s73, %s74
      %p86 = scmp.eq.s32.totalorder %s17, 1
      %p87 = por %p85, %p86
      %p89 = scmp.ne.s32.totalorder %s74, %s88
      %p90 = scmp.eq.s32.totalorder %s17, 0
      %p91 = por %p89, %p90
      %s92 = ssub.s32 %s11, %s18
      %p93 = scmp.eq.s32.totalorder %s92, 0
      %s95 = sadd.s32 %s94, 1
      %s96 = scalar_select %p93, %s94, %s95
      %p99 = pneg %p93
      %p100 = scmp.eq.s32.totalorder %s11, 1
      %p101 = por %p99, %p100
      %p102 = scmp.ne.s32.totalorder %s94, %s97
      %p103 = scmp.eq.s32.totalorder %s11, 0
      %p104 = por %p102, %p103
      %p105 = scmp.ne.s32.totalorder %s94, %s97
      %p106 = scmp.eq.s32.totalorder %s16, 1
      %p107 = por %p105, %p106
      %p108 = scmp.ne.s32.totalorder %s97, %s98
      %p109 = scmp.eq.s32.totalorder %s16, 0
      %p110 = por %p108, %p109
      %p111 = scmp.ne.s32.totalorder %s97, %s98
      %p112 = scmp.eq.s32.totalorder %s17, 1
      %p113 = por %p111, %p112
      %p115 = scmp.ne.s32.totalorder %s98, %s114
      %p116 = scmp.eq.s32.totalorder %s17, 0
      %p117 = por %p115, %p116
      %s118 = ssub.s32 %s11, %s18
      %p119 = scmp.eq.s32.totalorder %s118, 0
      %s121 = sadd.s32 %s120, 1
      %s122 = scalar_select %p119, %s120, %s121
      %p125 = pneg %p119
      %p126 = scmp.eq.s32.totalorder %s11, 1
      %p127 = por %p125, %p126
      %p128 = scmp.ne.s32.totalorder %s120, %s123
      %p129 = scmp.eq.s32.totalorder %s11, 0
      %p130 = por %p128, %p129
      %p131 = scmp.ne.s32.totalorder %s120, %s123
      %p132 = scmp.eq.s32.totalorder %s16, 1
      %p133 = por %p131, %p132
      %p134 = scmp.ne.s32.totalorder %s123, %s124
      %p135 = scmp.eq.s32.totalorder %s16, 0
      %p136 = por %p134, %p135
      %p137 = scmp.ne.s32.totalorder %s123, %s124
      %p138 = scmp.eq.s32.totalorder %s17, 1
      %p139 = por %p137, %p138
      %p141 = scmp.ne.s32.totalorder %s124, %s140
      %p142 = scmp.eq.s32.totalorder %s17, 0
      %p143 = por %p141, %p142
      %p144 = scmp.le.s32.totalorder 1, %s11
      %p145 = scmp.lt.s32.totalorder %s11, 3
      %p146 = pnand %p144, %p145
      %p147 = pneg %p146
      // Predicated region
      $region9: #{conv_lstm_cell.1} parent=5 // pred_check
        _
      $region10: #{conv_lstm_cell.1} parent=5 // pred_check_branch
        %149 = sbr.rel (%p146) target = $region12
      $region11: #{conv_lstm_cell.1} parent=5 // pred_region
        %s150 = ssub.s32 %s11, 1
        // Predicated region
        $region13: #{conv_lstm_cell.1} parent=11 // pred_check
          %p151 = pneg %p84
        $region14: #{conv_lstm_cell.1} parent=11 // pred_check_branch
          %153 = sbr.rel (%p151) target = $region16
        $region15: #{conv_lstm_cell.1} parent=11 // pred_region
          _
        $region16: #{conv_lstm_cell.1} parent=11 // pred_fallthru
          _
      $region12: #{conv_lstm_cell.1} parent=5 // pred_fallthru
        _
      %p154 = scmp.lt.s32.totalorder %s11, 2
      // Predicated region
      $region17: #{conv_lstm_cell.1} parent=5 // pred_check
        %p155 = pneg %p154
      $region18: #{conv_lstm_cell.1} parent=5 // pred_check_branch
        %157 = sbr.rel (%p155) target = $region20
      $region19: #{conv_lstm_cell.1} parent=5 // pred_region
        // Predicated region
        $region21: #{conv_lstm_cell.1} parent=19 // pred_check
          %p158 = pneg %p31
        $region22: #{conv_lstm_cell.1} parent=19 // pred_check_branch
          %160 = sbr.rel (%p158) target = $region24
        $region23: #{conv_lstm_cell.1} parent=19 // pred_region
          %s161 = sand.u32 %s21, 1
          %s162 = sand.u32 %s21, 1
          %s163 = smul.addr %s162, 768
          %s164 = scalar_lea.vmem [#allocation2], %s163
          %s165 = smul.u32 2, %s11
          %s166 = smul.addr %s165, 8
          %s167 = scalar_lea.vmem %s0, %s166
          // Predicated region
          $region25: #{conv_lstm_cell.1} parent=23 // pred_check
            _
          $region26: #{conv_lstm_cell.1} parent=23 // pred_check_branch
            %169 = sbr.rel (0) target = $region28
          $region27: #{conv_lstm_cell.1} parent=23 // pred_region
            // Predicated region
            $region29: #{conv_lstm_cell.1} parent=27 // pred_check
              _
            $region30: #{conv_lstm_cell.1} parent=27 // pred_check_branch
              %171 = sbr.rel (0) target = $region32
            $region31: #{conv_lstm_cell.1} parent=27 // pred_region
              loop: start=0, step=1, limit=1
              $region33: #{conv_lstm_cell.1} parent=31 // loop_pre_header
                _
              $region34: #{conv_lstm_cell.1} parent=31 // loop_header
                %s173 = sphi 0, %s177
                %p174 = scmp.ge.s32.totalorder %s173, 1
                %s178 = sphi %s167, %s167
                %s179 = sphi %s164, %s164
              $region35: #{conv_lstm_cell.1} parent=31 // loop_header_branch
                %176 = sbr.rel (%p174) target = $region39
              $region36: #{conv_lstm_cell.1} parent=31 // loop_body
                %v180 = vld [vmem:[%s178] sm:$0xff]
                %181 = vst [vmem:[%s179] sm:$0xff] %v180
                %v182 = vld [vmem:[%s178 + $0x8] sm:$0xff]
                %183 = vst [vmem:[%s179 + $0x8] sm:$0xff] %v182
                %v184 = vld [vmem:[%s178 + $0x20] sm:$0xff]
                %185 = vst [vmem:[%s179 + $0x10] sm:$0xff] %v184
                %v186 = vld [vmem:[%s178 + $0x28] sm:$0xff]
                %187 = vst [vmem:[%s179 + $0x18] sm:$0xff] %v186
                %v188 = vld [vmem:[%s178 + $0x40] sm:$0xff]
                %189 = vst [vmem:[%s179 + $0x20] sm:$0xff] %v188
                %v190 = vld [vmem:[%s178 + $0x48] sm:$0xff]
                %191 = vst [vmem:[%s179 + $0x28] sm:$0xff] %v190
                %v192 = vld [vmem:[%s178 + $0x60] sm:$0xff]
                %193 = vst [vmem:[%s179 + $0x30] sm:$0xff] %v192
                %v194 = vld [vmem:[%s178 + $0x68] sm:$0xff]
                %195 = vst [vmem:[%s179 + $0x38] sm:$0xff] %v194
                %v196 = vld [vmem:[%s178 + $0x80] sm:$0xff]
                %197 = vst [vmem:[%s179 + $0x40] sm:$0xff] %v196
                %v198 = vld [vmem:[%s178 + $0x88] sm:$0xff]
                %199 = vst [vmem:[%s179 + $0x48] sm:$0xff] %v198
                %v200 = vld [vmem:[%s178 + $0xa0] sm:$0xff]
                %201 = vst [vmem:[%s179 + $0x50] sm:$0xff] %v200
                %v202 = vld [vmem:[%s178 + $0xa8] sm:$0xff]
                %203 = vst [vmem:[%s179 + $0x58] sm:$0xff] %v202
                %v204 = vld [vmem:[%s178 + $0xc0] sm:$0xff]
                %205 = vst [vmem:[%s179 + $0x60] sm:$0xff] %v204
                %v206 = vld [vmem:[%s178 + $0xc8] sm:$0xff]
                %207 = vst [vmem:[%s179 + $0x68] sm:$0xff] %v206
                %v208 = vld [vmem:[%s178 + $0xe0] sm:$0xff]
                %209 = vst [vmem:[%s179 + $0x70] sm:$0xff] %v208
                %v210 = vld [vmem:[%s178 + $0xe8] sm:$0xff]
                %211 = vst [vmem:[%s179 + $0x78] sm:$0xff] %v210
                %v212 = vld [vmem:[%s178 + $0x100] sm:$0xff]
                %213 = vst [vmem:[%s179 + $0x80] sm:$0xff] %v212
                %v214 = vld [vmem:[%s178 + $0x108] sm:$0xff]
                %215 = vst [vmem:[%s179 + $0x88] sm:$0xff] %v214
                %v216 = vld [vmem:[%s178 + $0x120] sm:$0xff]
                %217 = vst [vmem:[%s179 + $0x90] sm:$0xff] %v216
                %v218 = vld [vmem:[%s178 + $0x128] sm:$0xff]
                %219 = vst [vmem:[%s179 + $0x98] sm:$0xff] %v218
                %v220 = vld [vmem:[%s178 + $0x140] sm:$0xff]
                %221 = vst [vmem:[%s179 + $0xa0] sm:$0xff] %v220
                %v222 = vld [vmem:[%s178 + $0x148] sm:$0xff]
                %223 = vst [vmem:[%s179 + $0xa8] sm:$0xff] %v222
                %v224 = vld [vmem:[%s178 + $0x160] sm:$0xff]
                %225 = vst [vmem:[%s179 + $0xb0] sm:$0xff] %v224
                %v226 = vld [vmem:[%s178 + $0x168] sm:$0xff]
                %227 = vst [vmem:[%s179 + $0xb8] sm:$0xff] %v226
                %v228 = vld [vmem:[%s178 + $0x180] sm:$0xff]
                %229 = vst [vmem:[%s179 + $0xc0] sm:$0xff] %v228
                %v230 = vld [vmem:[%s178 + $0x188] sm:$0xff]
                %231 = vst [vmem:[%s179 + $0xc8] sm:$0xff] %v230
                %v232 = vld [vmem:[%s178 + $0x1a0] sm:$0xff]
                %233 = vst [vmem:[%s179 + $0xd0] sm:$0xff] %v232
                %v234 = vld [vmem:[%s178 + $0x1a8] sm:$0xff]
                %235 = vst [vmem:[%s179 + $0xd8] sm:$0xff] %v234
                %v236 = vld [vmem:[%s178 + $0x1c0] sm:$0xff]
                %237 = vst [vmem:[%s179 + $0xe0] sm:$0xff] %v236
                %v238 = vld [vmem:[%s178 + $0x1c8] sm:$0xff]
                %239 = vst [vmem:[%s179 + $0xe8] sm:$0xff] %v238
                %v240 = vld [vmem:[%s178 + $0x1e0] sm:$0xff]
                %241 = vst [vmem:[%s179 + $0xf0] sm:$0xff] %v240
                %v242 = vld [vmem:[%s178 + $0x1e8] sm:$0xff]
                %243 = vst [vmem:[%s179 + $0xf8] sm:$0xff] %v242
                %v244 = vld [vmem:[%s178 + $0x200] sm:$0xff]
                %245 = vst [vmem:[%s179 + $0x100] sm:$0xff] %v244
                %v246 = vld [vmem:[%s178 + $0x208] sm:$0xff]
                %247 = vst [vmem:[%s179 + $0x108] sm:$0xff] %v246
                %v248 = vld [vmem:[%s178 + $0x220] sm:$0xff]
                %249 = vst [vmem:[%s179 + $0x110] sm:$0xff] %v248
                %v250 = vld [vmem:[%s178 + $0x228] sm:$0xff]
                %251 = vst [vmem:[%s179 + $0x118] sm:$0xff] %v250
                %v252 = vld [vmem:[%s178 + $0x240] sm:$0xff]
                %253 = vst [vmem:[%s179 + $0x120] sm:$0xff] %v252
                %v254 = vld [vmem:[%s178 + $0x248] sm:$0xff]
                %255 = vst [vmem:[%s179 + $0x128] sm:$0xff] %v254
                %v256 = vld [vmem:[%s178 + $0x260] sm:$0xff]
                %257 = vst [vmem:[%s179 + $0x130] sm:$0xff] %v256
                %v258 = vld [vmem:[%s178 + $0x268] sm:$0xff]
                %259 = vst [vmem:[%s179 + $0x138] sm:$0xff] %v258
                %v260 = vld [vmem:[%s178 + $0x280] sm:$0xff]
                %261 = vst [vmem:[%s179 + $0x140] sm:$0xff] %v260
                %v262 = vld [vmem:[%s178 + $0x288] sm:$0xff]
                %263 = vst [vmem:[%s179 + $0x148] sm:$0xff] %v262
                %v264 = vld [vmem:[%s178 + $0x2a0] sm:$0xff]
                %265 = vst [vmem:[%s179 + $0x150] sm:$0xff] %v264
                %v266 = vld [vmem:[%s178 + $0x2a8] sm:$0xff]
                %267 = vst [vmem:[%s179 + $0x158] sm:$0xff] %v266
                %v268 = vld [vmem:[%s178 + $0x2c0] sm:$0xff]
                %269 = vst [vmem:[%s179 + $0x160] sm:$0xff] %v268
                %v270 = vld [vmem:[%s178 + $0x2c8] sm:$0xff]
                %271 = vst [vmem:[%s179 + $0x168] sm:$0xff] %v270
                %v272 = vld [vmem:[%s178 + $0x2e0] sm:$0xff]
                %273 = vst [vmem:[%s179 + $0x170] sm:$0xff] %v272
                %v274 = vld [vmem:[%s178 + $0x2e8] sm:$0xff]
                %275 = vst [vmem:[%s179 + $0x178] sm:$0xff] %v274
                %v276 = vld [vmem:[%s178 + $0x300] sm:$0xff]
                %277 = vst [vmem:[%s179 + $0x180] sm:$0xff] %v276
                %v278 = vld [vmem:[%s178 + $0x308] sm:$0xff]
                %279 = vst [vmem:[%s179 + $0x188] sm:$0xff] %v278
                %v280 = vld [vmem:[%s178 + $0x320] sm:$0xff]
                %281 = vst [vmem:[%s179 + $0x190] sm:$0xff] %v280
                %v282 = vld [vmem:[%s178 + $0x328] sm:$0xff]
                %283 = vst [vmem:[%s179 + $0x198] sm:$0xff] %v282
                %v284 = vld [vmem:[%s178 + $0x340] sm:$0xff]
                %285 = vst [vmem:[%s179 + $0x1a0] sm:$0xff] %v284
                %v286 = vld [vmem:[%s178 + $0x348] sm:$0xff]
                %287 = vst [vmem:[%s179 + $0x1a8] sm:$0xff] %v286
                %v288 = vld [vmem:[%s178 + $0x360] sm:$0xff]
                %289 = vst [vmem:[%s179 + $0x1b0] sm:$0xff] %v288
                %v290 = vld [vmem:[%s178 + $0x368] sm:$0xff]
                %291 = vst [vmem:[%s179 + $0x1b8] sm:$0xff] %v290
                %v292 = vld [vmem:[%s178 + $0x380] sm:$0xff]
                %293 = vst [vmem:[%s179 + $0x1c0] sm:$0xff] %v292
                %v294 = vld [vmem:[%s178 + $0x388] sm:$0xff]
                %295 = vst [vmem:[%s179 + $0x1c8] sm:$0xff] %v294
                %v296 = vld [vmem:[%s178 + $0x3a0] sm:$0xff]
                %297 = vst [vmem:[%s179 + $0x1d0] sm:$0xff] %v296
                %v298 = vld [vmem:[%s178 + $0x3a8] sm:$0xff]
                %299 = vst [vmem:[%s179 + $0x1d8] sm:$0xff] %v298
                %v300 = vld [vmem:[%s178 + $0x3c0] sm:$0xff]
                %301 = vst [vmem:[%s179 + $0x1e0] sm:$0xff] %v300
                %v302 = vld [vmem:[%s178 + $0x3c8] sm:$0xff]
                %303 = vst [vmem:[%s179 + $0x1e8] sm:$0xff] %v302
                %v304 = vld [vmem:[%s178 + $0x3e0] sm:$0xff]
                %305 = vst [vmem:[%s179 + $0x1f0] sm:$0xff] %v304
                %v306 = vld [vmem:[%s178 + $0x3e8] sm:$0xff]
                %307 = vst [vmem:[%s179 + $0x1f8] sm:$0xff] %v306
                %v308 = vld [vmem:[%s178 + $0x400] sm:$0xff]
                %309 = vst [vmem:[%s179 + $0x200] sm:$0xff] %v308
                %v310 = vld [vmem:[%s178 + $0x408] sm:$0xff]
                %311 = vst [vmem:[%s179 + $0x208] sm:$0xff] %v310
                %v312 = vld [vmem:[%s178 + $0x420] sm:$0xff]
                %313 = vst [vmem:[%s179 + $0x210] sm:$0xff] %v312
                %v314 = vld [vmem:[%s178 + $0x428] sm:$0xff]
                %315 = vst [vmem:[%s179 + $0x218] sm:$0xff] %v314
                %v316 = vld [vmem:[%s178 + $0x440] sm:$0xff]
                %317 = vst [vmem:[%s179 + $0x220] sm:$0xff] %v316
                %v318 = vld [vmem:[%s178 + $0x448] sm:$0xff]
                %319 = vst [vmem:[%s179 + $0x228] sm:$0xff] %v318
                %v320 = vld [vmem:[%s178 + $0x460] sm:$0xff]
                %321 = vst [vmem:[%s179 + $0x230] sm:$0xff] %v320
                %v322 = vld [vmem:[%s178 + $0x468] sm:$0xff]
                %323 = vst [vmem:[%s179 + $0x238] sm:$0xff] %v322
                %v324 = vld [vmem:[%s178 + $0x480] sm:$0xff]
                %325 = vst [vmem:[%s179 + $0x240] sm:$0xff] %v324
                %v326 = vld [vmem:[%s178 + $0x488] sm:$0xff]
                %327 = vst [vmem:[%s179 + $0x248] sm:$0xff] %v326
                %v328 = vld [vmem:[%s178 + $0x4a0] sm:$0xff]
                %329 = vst [vmem:[%s179 + $0x250] sm:$0xff] %v328
                %v330 = vld [vmem:[%s178 + $0x4a8] sm:$0xff]
                %331 = vst [vmem:[%s179 + $0x258] sm:$0xff] %v330
                %v332 = vld [vmem:[%s178 + $0x4c0] sm:$0xff]
                %333 = vst [vmem:[%s179 + $0x260] sm:$0xff] %v332
                %v334 = vld [vmem:[%s178 + $0x4c8] sm:$0xff]
                %335 = vst [vmem:[%s179 + $0x268] sm:$0xff] %v334
                %v336 = vld [vmem:[%s178 + $0x4e0] sm:$0xff]
                %337 = vst [vmem:[%s179 + $0x270] sm:$0xff] %v336
                %v338 = vld [vmem:[%s178 + $0x4e8] sm:$0xff]
                %339 = vst [vmem:[%s179 + $0x278] sm:$0xff] %v338
                %v340 = vld [vmem:[%s178 + $0x500] sm:$0xff]
                %341 = vst [vmem:[%s179 + $0x280] sm:$0xff] %v340
                %v342 = vld [vmem:[%s178 + $0x508] sm:$0xff]
                %343 = vst [vmem:[%s179 + $0x288] sm:$0xff] %v342
                %v344 = vld [vmem:[%s178 + $0x520] sm:$0xff]
                %345 = vst [vmem:[%s179 + $0x290] sm:$0xff] %v344
                %v346 = vld [vmem:[%s178 + $0x528] sm:$0xff]
                %347 = vst [vmem:[%s179 + $0x298] sm:$0xff] %v346
                %v348 = vld [vmem:[%s178 + $0x540] sm:$0xff]
                %349 = vst [vmem:[%s179 + $0x2a0] sm:$0xff] %v348
                %v350 = vld [vmem:[%s178 + $0x548] sm:$0xff]
                %351 = vst [vmem:[%s179 + $0x2a8] sm:$0xff] %v350
                %v352 = vld [vmem:[%s178 + $0x560] sm:$0xff]
                %353 = vst [vmem:[%s179 + $0x2b0] sm:$0xff] %v352
                %v354 = vld [vmem:[%s178 + $0x568] sm:$0xff]
                %355 = vst [vmem:[%s179 + $0x2b8] sm:$0xff] %v354
                %v356 = vld [vmem:[%s178 + $0x580] sm:$0xff]
                %357 = vst [vmem:[%s179 + $0x2c0] sm:$0xff] %v356
                %v358 = vld [vmem:[%s178 + $0x588] sm:$0xff]
                %359 = vst [vmem:[%s179 + $0x2c8] sm:$0xff] %v358
                %v360 = vld [vmem:[%s178 + $0x5a0] sm:$0xff]
                %361 = vst [vmem:[%s179 + $0x2d0] sm:$0xff] %v360
                %v362 = vld [vmem:[%s178 + $0x5a8] sm:$0xff]
                %363 = vst [vmem:[%s179 + $0x2d8] sm:$0xff] %v362
                %v364 = vld [vmem:[%s178 + $0x5c0] sm:$0xff]
                %365 = vst [vmem:[%s179 + $0x2e0] sm:$0xff] %v364
                %v366 = vld [vmem:[%s178 + $0x5c8] sm:$0xff]
                %367 = vst [vmem:[%s179 + $0x2e8] sm:$0xff] %v366
                %v368 = vld [vmem:[%s178 + $0x5e0] sm:$0xff]
                %369 = vst [vmem:[%s179 + $0x2f0] sm:$0xff] %v368
                %v370 = vld [vmem:[%s178 + $0x5e8] sm:$0xff]
                %371 = vst [vmem:[%s179 + $0x2f8] sm:$0xff] %v370
              $region37: #{conv_lstm_cell.1} parent=31 // loop_footer
                %s177 = sadd.s32 1, %s173
              $region38: #{conv_lstm_cell.1} parent=31 // loop_footer_branch
                %172 = sbr.rel target = $region34
              $region39: #{conv_lstm_cell.1} parent=31 // loop_exit
                _
            $region32: #{conv_lstm_cell.1} parent=27 // pred_fallthru
              _
            // Predicated region
            $region40: #{conv_lstm_cell.1} parent=27 // pred_check
              _
            $region41: #{conv_lstm_cell.1} parent=27 // pred_check_branch
              %373 = sbr.rel target = $region43
            $region42: #{conv_lstm_cell.1} parent=27 // pred_region
              _
            $region43: #{conv_lstm_cell.1} parent=27 // pred_fallthru
              _
          $region28: #{conv_lstm_cell.1} parent=23 // pred_fallthru
            _
          %374 = vnop
        $region24: #{conv_lstm_cell.1} parent=19 // pred_fallthru
          _
        // Predicated region
        $region44: #{conv_lstm_cell.1} parent=19 // pred_check
          %p375 = pneg %p57
        $region45: #{conv_lstm_cell.1} parent=19 // pred_check_branch
          %377 = sbr.rel (%p375) target = $region47
        $region46: #{conv_lstm_cell.1} parent=19 // pred_region
          %s378 = sand.u32 %s47, 1
          %s379 = sand.u32 %s47, 1
          %s380 = smul.addr %s379, 64
          %s381 = scalar_lea.vmem [#allocation3], %s380
          %s382 = smul.u32 2, %s11
          %s383 = smul.addr %s382, 8
          %s384 = scalar_lea.vmem %s1, %s383
          // Predicated region
          $region48: #{conv_lstm_cell.1} parent=46 // pred_check
            _
          $region49: #{conv_lstm_cell.1} parent=46 // pred_check_branch
            %386 = sbr.rel (0) target = $region51
          $region50: #{conv_lstm_cell.1} parent=46 // pred_region
            // Predicated region
            $region52: #{conv_lstm_cell.1} parent=50 // pred_check
              _
            $region53: #{conv_lstm_cell.1} parent=50 // pred_check_branch
              %388 = sbr.rel (0) target = $region55
            $region54: #{conv_lstm_cell.1} parent=50 // pred_region
              loop: start=0, step=1, limit=1
              $region56: #{conv_lstm_cell.1} parent=54 // loop_pre_header
                _
              $region57: #{conv_lstm_cell.1} parent=54 // loop_header
                %s390 = sphi 0, %s394
                %p391 = scmp.ge.s32.totalorder %s390, 1
                %s395 = sphi %s384, %s384
                %s396 = sphi %s381, %s381
              $region58: #{conv_lstm_cell.1} parent=54 // loop_header_branch
                %393 = sbr.rel (%p391) target = $region62
              $region59: #{conv_lstm_cell.1} parent=54 // loop_body
                %v397 = vld [vmem:[%s395] sm:$0xff]
                %398 = vst [vmem:[%s396] sm:$0xff] %v397
                %v399 = vld [vmem:[%s395 + $0x8] sm:$0xff]
                %400 = vst [vmem:[%s396 + $0x8] sm:$0xff] %v399
                %v401 = vld [vmem:[%s395 + $0x20] sm:$0xff]
                %402 = vst [vmem:[%s396 + $0x10] sm:$0xff] %v401
                %v403 = vld [vmem:[%s395 + $0x28] sm:$0xff]
                %404 = vst [vmem:[%s396 + $0x18] sm:$0xff] %v403
                %v405 = vld [vmem:[%s395 + $0x40] sm:$0xff]
                %406 = vst [vmem:[%s396 + $0x20] sm:$0xff] %v405
                %v407 = vld [vmem:[%s395 + $0x48] sm:$0xff]
                %408 = vst [vmem:[%s396 + $0x28] sm:$0xff] %v407
                %v409 = vld [vmem:[%s395 + $0x60] sm:$0xff]
                %410 = vst [vmem:[%s396 + $0x30] sm:$0xff] %v409
                %v411 = vld [vmem:[%s395 + $0x68] sm:$0xff]
                %412 = vst [vmem:[%s396 + $0x38] sm:$0xff] %v411
              $region60: #{conv_lstm_cell.1} parent=54 // loop_footer
                %s394 = sadd.s32 1, %s390
              $region61: #{conv_lstm_cell.1} parent=54 // loop_footer_branch
                %389 = sbr.rel target = $region57
              $region62: #{conv_lstm_cell.1} parent=54 // loop_exit
                _
            $region55: #{conv_lstm_cell.1} parent=50 // pred_fallthru
              _
            // Predicated region
            $region63: #{conv_lstm_cell.1} parent=50 // pred_check
              _
            $region64: #{conv_lstm_cell.1} parent=50 // pred_check_branch
              %414 = sbr.rel target = $region66
            $region65: #{conv_lstm_cell.1} parent=50 // pred_region
              _
            $region66: #{conv_lstm_cell.1} parent=50 // pred_fallthru
              _
          $region51: #{conv_lstm_cell.1} parent=46 // pred_fallthru
            _
          %415 = vnop
        $region47: #{conv_lstm_cell.1} parent=19 // pred_fallthru
          _
      $region20: #{conv_lstm_cell.1} parent=5 // pred_fallthru
        _
      %p416 = scmp.le.s32.totalorder 1, %s11
      %p417 = scmp.lt.s32.totalorder %s11, 3
      %p418 = pnand %p416, %p417
      %p419 = pneg %p418
      // Predicated region
      $region67: #{conv_lstm_cell.1} parent=5 // pred_check
        _
      $region68: #{conv_lstm_cell.1} parent=5 // pred_check_branch
        %421 = sbr.rel (%p418) target = $region70
      $region69: #{conv_lstm_cell.1} parent=5 // pred_region
        %s422 = ssub.s32 %s11, 1
        %s423 = sand.u32 %s24, 1
        %s424 = sand.u32 %s24, 1
        %s425 = smul.addr %s424, 768
        %s426 = scalar_lea.vmem [#allocation2], %s425
        // Predicated region
        $region71: #{conv_lstm_cell.1} parent=69 // pred_check
          %p427 = pneg %p37
        $region72: #{conv_lstm_cell.1} parent=69 // pred_check_branch
          %429 = sbr.rel (%p427) target = $region74
        $region73: #{conv_lstm_cell.1} parent=69 // pred_region
          _
        $region74: #{conv_lstm_cell.1} parent=69 // pred_fallthru
          _
        %s430 = sand.u32 %s50, 1
        %s431 = sand.u32 %s50, 1
        %s432 = smul.addr %s431, 64
        %s433 = scalar_lea.vmem [#allocation3], %s432
        // Predicated region
        $region75: #{conv_lstm_cell.1} parent=69 // pred_check
          %p434 = pneg %p63
        $region76: #{conv_lstm_cell.1} parent=69 // pred_check_branch
          %436 = sbr.rel (%p434) target = $region78
        $region77: #{conv_lstm_cell.1} parent=69 // pred_region
          _
        $region78: #{conv_lstm_cell.1} parent=69 // pred_fallthru
          _
        %s437 = sand.u32 %s24, 1
        %s438 = sand.u32 %s24, 1
        %s439 = smul.addr %s438, 768
        %s440 = scalar_lea.vmem [#allocation2], %s439
        %p441 = pneg %p37
        %p442 = pneg %p34
        %s443 = sand.u32 %s50, 1
        %s444 = sand.u32 %s50, 1
        %s445 = smul.addr %s444, 64
        %s446 = scalar_lea.vmem [#allocation3], %s445
        %p447 = pneg %p63
        %p448 = pneg %p60
        %p449 = pneg %p84
        %p450 = pneg %p81
        %p451 = pneg %p110
        %p452 = pneg %p107
        %s453 = sand.u32 %s97, 1
        %s454 = sand.u32 %s97, 1
        %s455 = smul.addr %s454, 64
        %s456 = scalar_lea.vmem [#allocation4], %s455
        %p457 = pneg %p136
        %p458 = pneg %p133
        %s459 = sand.u32 %s123, 1
        %s460 = sand.u32 %s123, 1
        %s461 = smul.addr %s460, 64
        %s462 = scalar_lea.vmem [#allocation5], %s461
        %s463 = smul.u32 2, %s16
        %s464 = smul.u32 2, %s16
        %s465 = smul.u32 2, %s16
        %s466 = smul.u32 2, %s16
        %v467 = vld [vmem:[%s2] sm:$0xff]
        %v468 = vld [vmem:[%s2 + $0x8] sm:$0xff]
        %v469 = vld [vmem:[%s2 + $0x10] sm:$0xff]
        %v470 = vld [vmem:[%s2 + $0x18] sm:$0xff]
        %v471 = vld [vmem:[%s2 + $0x20] sm:$0xff]
        %v472 = vld [vmem:[%s2 + $0x28] sm:$0xff]
        %v473 = vld [vmem:[%s2 + $0x30] sm:$0xff]
        %v474 = vld [vmem:[%s2 + $0x38] sm:$0xff]
        %v475 = vld [vmem:[%s2 + $0x40] sm:$0xff]
        %v476 = vld [vmem:[%s2 + $0x48] sm:$0xff]
        %v477 = vld [vmem:[%s2 + $0x50] sm:$0xff]
        %v478 = vld [vmem:[%s2 + $0x58] sm:$0xff]
        %v479 = vld [vmem:[%s2 + $0x60] sm:$0xff]
        %v480 = vld [vmem:[%s2 + $0x68] sm:$0xff]
        %v481 = vld [vmem:[%s2 + $0x70] sm:$0xff]
        %v482 = vld [vmem:[%s2 + $0x78] sm:$0xff]
        %v483 = vld [vmem:[%s2 + $0x80] sm:$0xff]
        %v484 = vld [vmem:[%s2 + $0x88] sm:$0xff]
        %v485 = vld [vmem:[%s2 + $0x90] sm:$0xff]
        %v486 = vld [vmem:[%s2 + $0x98] sm:$0xff]
        %v487 = vld [vmem:[%s2 + $0xa0] sm:$0xff]
        %v488 = vld [vmem:[%s2 + $0xa8] sm:$0xff]
        %v489 = vld [vmem:[%s2 + $0xb0] sm:$0xff]
        %v490 = vld [vmem:[%s2 + $0xb8] sm:$0xff]
        %v491 = vld [vmem:[%s2 + $0xc0] sm:$0xff]
        %v492 = vld [vmem:[%s2 + $0xc8] sm:$0xff]
        %v493 = vld [vmem:[%s2 + $0xd0] sm:$0xff]
        %v494 = vld [vmem:[%s2 + $0xd8] sm:$0xff]
        %v495 = vld [vmem:[%s2 + $0xe0] sm:$0xff]
        %v496 = vld [vmem:[%s2 + $0xe8] sm:$0xff]
        %v497 = vld [vmem:[%s2 + $0xf0] sm:$0xff]
        %v498 = vld [vmem:[%s2 + $0xf8] sm:$0xff]
        %v499 = vld [vmem:[%s2 + $0x100] sm:$0xff]
        %v500 = vld [vmem:[%s2 + $0x108] sm:$0xff]
        %v501 = vld [vmem:[%s2 + $0x110] sm:$0xff]
        %v502 = vld [vmem:[%s2 + $0x118] sm:$0xff]
        %v503 = vld [vmem:[%s2 + $0x120] sm:$0xff]
        %v504 = vld [vmem:[%s2 + $0x128] sm:$0xff]
        %v505 = vld [vmem:[%s2 + $0x130] sm:$0xff]
        %v506 = vld [vmem:[%s2 + $0x138] sm:$0xff]
        %v507 = vld [vmem:[%s2 + $0x140] sm:$0xff]
        %v508 = vld [vmem:[%s2 + $0x148] sm:$0xff]
        %v509 = vld [vmem:[%s2 + $0x150] sm:$0xff]
        %v510 = vld [vmem:[%s2 + $0x158] sm:$0xff]
        %v511 = vld [vmem:[%s2 + $0x160] sm:$0xff]
        %v512 = vld [vmem:[%s2 + $0x168] sm:$0xff]
        %v513 = vld [vmem:[%s2 + $0x170] sm:$0xff]
        %v514 = vld [vmem:[%s2 + $0x178] sm:$0xff]
        %v515 = vld [vmem:[%s426] sm:$0xff]
        %v516 = vld [vmem:[%s426 + $0x8] sm:$0xff]
        %v517 = vld [vmem:[%s426 + $0x10] sm:$0xff]
        %v518 = vld [vmem:[%s426 + $0x18] sm:$0xff]
        %v519 = vld [vmem:[%s426 + $0x20] sm:$0xff]
        %v520 = vld [vmem:[%s426 + $0x28] sm:$0xff]
        %v521 = vld [vmem:[%s426 + $0x30] sm:$0xff]
        %v522 = vld [vmem:[%s426 + $0x38] sm:$0xff]
        %v523 = vld [vmem:[%s426 + $0x40] sm:$0xff]
        %v524 = vld [vmem:[%s426 + $0x48] sm:$0xff]
        %v525 = vld [vmem:[%s426 + $0x50] sm:$0xff]
        %v526 = vld [vmem:[%s426 + $0x58] sm:$0xff]
        %v527 = vld [vmem:[%s426 + $0x60] sm:$0xff]
        %v528 = vld [vmem:[%s426 + $0x68] sm:$0xff]
        %v529 = vld [vmem:[%s426 + $0x70] sm:$0xff]
        %v530 = vld [vmem:[%s426 + $0x78] sm:$0xff]
        %v531 = vld [vmem:[%s426 + $0x80] sm:$0xff]
        %v532 = vld [vmem:[%s426 + $0x88] sm:$0xff]
        %v533 = vld [vmem:[%s426 + $0x90] sm:$0xff]
        %v534 = vld [vmem:[%s426 + $0x98] sm:$0xff]
        %v535 = vld [vmem:[%s426 + $0xa0] sm:$0xff]
        %v536 = vld [vmem:[%s426 + $0xa8] sm:$0xff]
        %v537 = vld [vmem:[%s426 + $0xb0] sm:$0xff]
        %v538 = vld [vmem:[%s426 + $0xb8] sm:$0xff]
        %v539 = vld [vmem:[%s426 + $0xc0] sm:$0xff]
        %v540 = vld [vmem:[%s426 + $0xc8] sm:$0xff]
        %v541 = vld [vmem:[%s426 + $0xd0] sm:$0xff]
        %v542 = vld [vmem:[%s426 + $0xd8] sm:$0xff]
        %v543 = vld [vmem:[%s426 + $0xe0] sm:$0xff]
        %v544 = vld [vmem:[%s426 + $0xe8] sm:$0xff]
        %v545 = vld [vmem:[%s426 + $0xf0] sm:$0xff]
        %v546 = vld [vmem:[%s426 + $0xf8] sm:$0xff]
        %v547 = vld [vmem:[%s426 + $0x100] sm:$0xff]
        %v548 = vld [vmem:[%s426 + $0x108] sm:$0xff]
        %v549 = vld [vmem:[%s426 + $0x110] sm:$0xff]
        %v550 = vld [vmem:[%s426 + $0x118] sm:$0xff]
        %v551 = vld [vmem:[%s426 + $0x120] sm:$0xff]
        %v552 = vld [vmem:[%s426 + $0x128] sm:$0xff]
        %v553 = vld [vmem:[%s426 + $0x130] sm:$0xff]
        %v554 = vld [vmem:[%s426 + $0x138] sm:$0xff]
        %v555 = vld [vmem:[%s426 + $0x140] sm:$0xff]
        %v556 = vld [vmem:[%s426 + $0x148] sm:$0xff]
        %v557 = vld [vmem:[%s426 + $0x150] sm:$0xff]
        %v558 = vld [vmem:[%s426 + $0x158] sm:$0xff]
        %v559 = vld [vmem:[%s426 + $0x160] sm:$0xff]
        %v560 = vld [vmem:[%s426 + $0x168] sm:$0xff]
        %v561 = vld [vmem:[%s426 + $0x170] sm:$0xff]
        %v562 = vld [vmem:[%s426 + $0x178] sm:$0xff]
        %v563 = vld [vmem:[%s426 + $0x180] sm:$0xff]
        %v564 = vld [vmem:[%s426 + $0x188] sm:$0xff]
        %v565 = vld [vmem:[%s426 + $0x190] sm:$0xff]
        %v566 = vld [vmem:[%s426 + $0x198] sm:$0xff]
        %v567 = vld [vmem:[%s426 + $0x1a0] sm:$0xff]
        %v568 = vld [vmem:[%s426 + $0x1a8] sm:$0xff]
        %v569 = vld [vmem:[%s426 + $0x1b0] sm:$0xff]
        %v570 = vld [vmem:[%s426 + $0x1b8] sm:$0xff]
        %v571 = vld [vmem:[%s426 + $0x1c0] sm:$0xff]
        %v572 = vld [vmem:[%s426 + $0x1c8] sm:$0xff]
        %v573 = vld [vmem:[%s426 + $0x1d0] sm:$0xff]
        %v574 = vld [vmem:[%s426 + $0x1d8] sm:$0xff]
        %v575 = vld [vmem:[%s426 + $0x1e0] sm:$0xff]
        %v576 = vld [vmem:[%s426 + $0x1e8] sm:$0xff]
        %v577 = vld [vmem:[%s426 + $0x1f0] sm:$0xff]
        %v578 = vld [vmem:[%s426 + $0x1f8] sm:$0xff]
        %v579 = vld [vmem:[%s426 + $0x200] sm:$0xff]
        %v580 = vld [vmem:[%s426 + $0x208] sm:$0xff]
        %v581 = vld [vmem:[%s426 + $0x210] sm:$0xff]
        %v582 = vld [vmem:[%s426 + $0x218] sm:$0xff]
        %v583 = vld [vmem:[%s426 + $0x220] sm:$0xff]
        %v584 = vld [vmem:[%s426 + $0x228] sm:$0xff]
        %v585 = vld [vmem:[%s426 + $0x230] sm:$0xff]
        %v586 = vld [vmem:[%s426 + $0x238] sm:$0xff]
        %v587 = vld [vmem:[%s426 + $0x240] sm:$0xff]
        %v588 = vld [vmem:[%s426 + $0x248] sm:$0xff]
        %v589 = vld [vmem:[%s426 + $0x250] sm:$0xff]
        %v590 = vld [vmem:[%s426 + $0x258] sm:$0xff]
        %v591 = vld [vmem:[%s426 + $0x260] sm:$0xff]
        %v592 = vld [vmem:[%s426 + $0x268] sm:$0xff]
        %v593 = vld [vmem:[%s426 + $0x270] sm:$0xff]
        %v594 = vld [vmem:[%s426 + $0x278] sm:$0xff]
        %v595 = vld [vmem:[%s426 + $0x280] sm:$0xff]
        %v596 = vld [vmem:[%s426 + $0x288] sm:$0xff]
        %v597 = vld [vmem:[%s426 + $0x290] sm:$0xff]
        %v598 = vld [vmem:[%s426 + $0x298] sm:$0xff]
        %v599 = vld [vmem:[%s426 + $0x2a0] sm:$0xff]
        %v600 = vld [vmem:[%s426 + $0x2a8] sm:$0xff]
        %v601 = vld [vmem:[%s426 + $0x2b0] sm:$0xff]
        %v602 = vld [vmem:[%s426 + $0x2b8] sm:$0xff]
        %v603 = vld [vmem:[%s426 + $0x2c0] sm:$0xff]
        %v604 = vld [vmem:[%s426 + $0x2c8] sm:$0xff]
        %v605 = vld [vmem:[%s426 + $0x2d0] sm:$0xff]
        %v606 = vld [vmem:[%s426 + $0x2d8] sm:$0xff]
        %v607 = vld [vmem:[%s426 + $0x2e0] sm:$0xff]
        %v608 = vld [vmem:[%s426 + $0x2e8] sm:$0xff]
        %v609 = vld [vmem:[%s426 + $0x2f0] sm:$0xff]
        %v610 = vld [vmem:[%s426 + $0x2f8] sm:$0xff]
        %611 = vmatprep.subr.mxu0 %v516
        %612 = vmatpush1.msra.mxu0 %v515
        %613 = vmatprep.subr.mxu0 %v518
        %614 = vmatpush1.msra.mxu0 %v517
        %615 = vmatprep.subr.mxu0 %v520
        %616 = vmatpush1.msra.mxu0 %v519
        %617 = vmatprep.subr.mxu0 %v522
        %618 = vmatpush1.msra.mxu0 %v521
        %619 = vmatprep.subr.mxu0 %v524
        %620 = vmatpush1.msra.mxu0 %v523
        %621 = vmatprep.subr.mxu0 %v526
        %622 = vmatpush1.msra.mxu0 %v525
        %623 = vmatprep.subr.mxu0 %v528
        %624 = vmatpush1.msra.mxu0 %v527
        %625 = vmatprep.subr.mxu0 %v530
        %626 = vmatpush1.msra.mxu0 %v529
        %627 = vmatprep.subr.mxu0 %v532
        %628 = vmatpush1.msra.mxu0 %v531
        %629 = vmatprep.subr.mxu0 %v534
        %630 = vmatpush1.msra.mxu0 %v533
        %631 = vmatprep.subr.mxu0 %v536
        %632 = vmatpush1.msra.mxu0 %v535
        %633 = vmatprep.subr.mxu0 %v538
        %634 = vmatpush1.msra.mxu0 %v537
        %635 = vmatprep.subr.mxu0 %v540
        %636 = vmatpush1.msra.mxu0 %v539
        %637 = vmatprep.subr.mxu0 %v542
        %638 = vmatpush1.msra.mxu0 %v541
        %639 = vmatprep.subr.mxu0 %v544
        %640 = vmatpush1.msra.mxu0 %v543
        %641 = vmatprep.subr.mxu0 %v546
        %642 = vmatpush1.msra.mxu0 %v545
        %643 = vmatprep.subr.mxu0 %v548
        %644 = vmatpush1.msra.mxu0 %v547
        %645 = vmatprep.subr.mxu0 %v550
        %646 = vmatpush1.msra.mxu0 %v549
        %647 = vmatprep.subr.mxu0 %v552
        %648 = vmatpush1.msra.mxu0 %v551
        %649 = vmatprep.subr.mxu0 %v554
        %650 = vmatpush1.msra.mxu0 %v553
        %651 = vmatprep.subr.mxu0 %v556
        %652 = vmatpush1.msra.mxu0 %v555
        %653 = vmatprep.subr.mxu0 %v558
        %654 = vmatpush1.msra.mxu0 %v557
        %655 = vmatprep.subr.mxu0 %v560
        %656 = vmatpush1.msra.mxu0 %v559
        %657 = vmatprep.subr.mxu0 %v562
        %658 = vmatpush1.msra.mxu0 %v561
        %659 = vmatprep.subr.mxu0 %v564
        %660 = vmatpush1.msra.mxu0 %v563
        %661 = vmatprep.subr.mxu0 %v566
        %662 = vmatpush1.msra.mxu0 %v565
        %663 = vmatprep.subr.mxu0 %v568
        %664 = vmatpush1.msra.mxu0 %v567
        %665 = vmatprep.subr.mxu0 %v570
        %666 = vmatpush1.msra.mxu0 %v569
        %667 = vmatprep.subr.mxu0 %v572
        %668 = vmatpush1.msra.mxu0 %v571
        %669 = vmatprep.subr.mxu0 %v574
        %670 = vmatpush1.msra.mxu0 %v573
        %671 = vmatprep.subr.mxu0 %v576
        %672 = vmatpush1.msra.mxu0 %v575
        %673 = vmatprep.subr.mxu0 %v578
        %674 = vmatpush1.msra.mxu0 %v577
        %675 = vmatprep.mubr.f32.mxu0 %v468
        %676 = vmatmul.mubr.f32.gmra.mrb[0].mxu0 %v467
        %v677 = vpop.f32.mrb[0].mxu0
        %v678 = vadd.f32 0.0, %v677
        %v679 = vpop.f32.mrb[0].mxu0
        %v680 = vadd.f32 0.0, %v679
        %681 = vmatprep.mubr.f32.mxu0 %v471
        %682 = vmatmul.mubr.f32.gmra.mrb[0].mxu0 %v470
        %v683 = vpop.f32.mrb[0].mxu0
        %v684 = vadd.f32 0.0, %v683
        %v685 = vpop.f32.mrb[0].mxu0
        %v686 = vadd.f32 0.0, %v685
        %687 = vmatprep.mubr.f32.mxu0 %v474
        %688 = vmatmul.mubr.f32.gmra.mrb[0].mxu0 %v473
        %v689 = vpop.f32.mrb[0].mxu0
        %v690 = vadd.f32 0.0, %v689
        %v691 = vpop.f32.mrb[0].mxu0
        %v692 = vadd.f32 0.0, %v691
        %693 = vmatprep.mubr.f32.mxu0 %v477
        %694 = vmatmul.mubr.f32.gmra.mrb[0].mxu0 %v476
        %v695 = vpop.f32.mrb[0].mxu0
        %v696 = vadd.f32 0.0, %v695
        %v697 = vpop.f32.mrb[0].mxu0
        %v698 = vadd.f32 0.0, %v697
        %699 = vmatprep.mubr.f32.mxu0 %v480
        %700 = vmatmul.mubr.f32.gmra.mrb[0].mxu0 %v479
        %v701 = vpop.f32.mrb[0].mxu0
        %v702 = vadd.f32 0.0, %v701
        %v703 = vpop.f32.mrb[0].mxu0
        %v704 = vadd.f32 0.0, %v703
        %705 = vmatprep.mubr.f32.mxu0 %v483
        %706 = vmatmul.mubr.f32.gmra.mrb[0].mxu0 %v482
        %v707 = vpop.f32.mrb[0].mxu0
        %v708 = vadd.f32 0.0, %v707
        %v709 = vpop.f32.mrb[0].mxu0
        %v710 = vadd.f32 0.0, %v709
        %711 = vmatprep.mubr.f32.mxu0 %v486
        %712 = vmatmul.mubr.f32.gmra.mrb[0].mxu0 %v485
        %v713 = vpop.f32.mrb[0].mxu0
        %v714 = vadd.f32 0.0, %v713
        %v715 = vpop.f32.mrb[0].mxu0
        %v716 = vadd.f32 0.0, %v715
        %717 = vmatprep.mubr.f32.mxu0 %v489
        %718 = vmatmul.mubr.f32.gmra.mrb[0].mxu0 %v488
        %v719 = vpop.f32.mrb[0].mxu0
        %v720 = vadd.f32 0.0, %v719
        %v721 = vpop.f32.mrb[0].mxu0
        %v722 = vadd.f32 0.0, %v721
        %723 = vmatprep.mubr.f32.mxu0 %v492
        %724 = vmatmul.mubr.f32.gmra.mrb[0].mxu0 %v491
        %v725 = vpop.f32.mrb[0].mxu0
        %v726 = vadd.f32 0.0, %v725
        %v727 = vpop.f32.mrb[0].mxu0
        %v728 = vadd.f32 0.0, %v727
        %729 = vmatprep.mubr.f32.mxu0 %v495
        %730 = vmatmul.mubr.f32.gmra.mrb[0].mxu0 %v494
        %v731 = vpop.f32.mrb[0].mxu0
        %v732 = vadd.f32 0.0, %v731
        %v733 = vpop.f32.mrb[0].mxu0
        %v734 = vadd.f32 0.0, %v733
        %735 = vmatprep.mubr.f32.mxu0 %v498
        %736 = vmatmul.mubr.f32.gmra.mrb[0].mxu0 %v497
        %v737 = vpop.f32.mrb[0].mxu0
        %v738 = vadd.f32 0.0, %v737
        %v739 = vpop.f32.mrb[0].mxu0
        %v740 = vadd.f32 0.0, %v739
        %741 = vmatprep.mubr.f32.mxu0 %v501
        %742 = vmatmul.mubr.f32.gmra.mrb[0].mxu0 %v500
        %v743 = vpop.f32.mrb[0].mxu0
        %v744 = vadd.f32 0.0, %v743
        %v745 = vpop.f32.mrb[0].mxu0
        %v746 = vadd.f32 0.0, %v745
        %747 = vmatprep.mubr.f32.mxu0 %v504
        %748 = vmatmul.mubr.f32.gmra.mrb[0].mxu0 %v503
        %v749 = vpop.f32.mrb[0].mxu0
        %v750 = vadd.f32 0.0, %v749
        %v751 = vpop.f32.mrb[0].mxu0
        %v752 = vadd.f32 0.0, %v751
        %753 = vmatprep.mubr.f32.mxu0 %v507
        %754 = vmatmul.mubr.f32.gmra.mrb[0].mxu0 %v506
        %v755 = vpop.f32.mrb[0].mxu0
        %v756 = vadd.f32 0.0, %v755
        %v757 = vpop.f32.mrb[0].mxu0
        %v758 = vadd.f32 0.0, %v757
        %759 = vmatprep.mubr.f32.mxu0 %v510
        %760 = vmatmul.mubr.f32.gmra.mrb[0].mxu0 %v509
        %v761 = vpop.f32.mrb[0].mxu0
        %v762 = vadd.f32 0.0, %v761
        %v763 = vpop.f32.mrb[0].mxu0
        %v764 = vadd.f32 0.0, %v763
        %765 = vmatprep.mubr.f32.mxu0 %v513
        %766 = vmatmul.mubr.f32.gmra.mrb[0].mxu0 %v512
        %v767 = vpop.f32.mrb[0].mxu0
        %v768 = vadd.f32 0.0, %v767
        %v769 = vpop.f32.mrb[0].mxu0
        %v770 = vadd.f32 0.0, %v769
        %771 = vdwg.mxu0
        %772 = vmatprep.subr.mxu0 %v580
        %773 = vmatpush1.msra.mxu0 %v579
        %774 = vmatprep.subr.mxu0 %v582
        %775 = vmatpush1.msra.mxu0 %v581
        %776 = vmatprep.subr.mxu0 %v584
        %777 = vmatpush1.msra.mxu0 %v583
        %778 = vmatprep.subr.mxu0 %v586
        %779 = vmatpush1.msra.mxu0 %v585
        %780 = vmatprep.subr.mxu0 %v588
        %781 = vmatpush1.msra.mxu0 %v587
        %782 = vmatprep.subr.mxu0 %v590
        %783 = vmatpush1.msra.mxu0 %v589
        %784 = vmatprep.subr.mxu0 %v592
        %785 = vmatpush1.msra.mxu0 %v591
        %786 = vmatprep.subr.mxu0 %v594
        %787 = vmatpush1.msra.mxu0 %v593
        %788 = vmatprep.subr.mxu0 %v596
        %789 = vmatpush1.msra.mxu0 %v595
        %790 = vmatprep.subr.mxu0 %v598
        %791 = vmatpush1.msra.mxu0 %v597
        %792 = vmatprep.subr.mxu0 %v600
        %793 = vmatpush1.msra.mxu0 %v599
        %794 = vmatprep.subr.mxu0 %v602
        %795 = vmatpush1.msra.mxu0 %v601
        %796 = vmatprep.subr.mxu0 %v604
        %797 = vmatpush1.msra.mxu0 %v603
        %798 = vmatprep.subr.mxu0 %v606
        %799 = vmatpush1.msra.mxu0 %v605
        %800 = vmatprep.subr.mxu0 %v608
        %801 = vmatpush1.msra.mxu0 %v607
        %802 = vmatprep.subr.mxu0 %v610
        %803 = vmatpush1.msra.mxu0 %v609
        %804 = vmatprep.subr.mxu0 0.0
        %805 = vmatpush1.msra.mxu0 0.0
        %806 = vmatprep.subr.mxu0 0.0
        %807 = vmatpush1.msra.mxu0 0.0
        %808 = vmatprep.subr.mxu0 0.0
        %809 = vmatpush1.msra.mxu0 0.0
        %810 = vmatprep.subr.mxu0 0.0
        %811 = vmatpush1.msra.mxu0 0.0
        %812 = vmatprep.subr.mxu0 0.0
        %813 = vmatpush1.msra.mxu0 0.0
        %814 = vmatprep.subr.mxu0 0.0
        %815 = vmatpush1.msra.mxu0 0.0
        %816 = vmatprep.subr.mxu0 0.0
        %817 = vmatpush1.msra.mxu0 0.0
        %818 = vmatprep.subr.mxu0 0.0
        %819 = vmatpush1.msra.mxu0 0.0
        %820 = vmatprep.subr.mxu0 0.0
        %821 = vmatpush1.msra.mxu0 0.0
        %822 = vmatprep.subr.mxu0 0.0
        %823 = vmatpush1.msra.mxu0 0.0
        %824 = vmatprep.subr.mxu0 0.0
        %825 = vmatpush1.msra.mxu0 0.0
        %826 = vmatprep.subr.mxu0 0.0
        %827 = vmatpush1.msra.mxu0 0.0
        %828 = vmatprep.subr.mxu0 0.0
        %829 = vmatpush1.msra.mxu0 0.0
        %830 = vmatprep.subr.mxu0 0.0
        %831 = vmatpush1.msra.mxu0 0.0
        %832 = vmatprep.subr.mxu0 0.0
        %833 = vmatpush1.msra.mxu0 0.0
        %834 = vmatprep.subr.mxu0 0.0
        %835 = vmatpush1.msra.mxu0 0.0
        %836 = vmatprep.mubr.f32.mxu0 0.0
        %837 = vmatmul.mubr.f32.gmra.mrb[0].mxu0 %v469
        %v838 = vpop.f32.mrb[0].mxu0
        %v839 = vadd.f32 %v678, %v838
        %v840 = vpop.f32.mrb[0].mxu0
        %v841 = vadd.f32 %v680, %v840
        %842 = vmatprep.mubr.f32.mxu0 0.0
        %843 = vmatmul.mubr.f32.gmra.mrb[0].mxu0 %v472
        %v844 = vpop.f32.mrb[0].mxu0
        %v845 = vadd.f32 %v684, %v844
        %v846 = vpop.f32.mrb[0].mxu0
        %v847 = vadd.f32 %v686, %v846
        %848 = vmatprep.mubr.f32.mxu0 0.0
        %849 = vmatmul.mubr.f32.gmra.mrb[0].mxu0 %v475
        %v850 = vpop.f32.mrb[0].mxu0
        %v851 = vadd.f32 %v690, %v850
        %v852 = vpop.f32.mrb[0].mxu0
        %v853 = vadd.f32 %v692, %v852
        %854 = vmatprep.mubr.f32.mxu0 0.0
        %855 = vmatmul.mubr.f32.gmra.mrb[0].mxu0 %v478
        %v856 = vpop.f32.mrb[0].mxu0
        %v857 = vadd.f32 %v696, %v856
        %v858 = vpop.f32.mrb[0].mxu0
        %v859 = vadd.f32 %v698, %v858
        %860 = vmatprep.mubr.f32.mxu0 0.0
        %861 = vmatmul.mubr.f32.gmra.mrb[0].mxu0 %v481
        %v862 = vpop.f32.mrb[0].mxu0
        %v863 = vadd.f32 %v702, %v862
        %v864 = vpop.f32.mrb[0].mxu0
        %v865 = vadd.f32 %v704, %v864
        %866 = vmatprep.mubr.f32.mxu0 0.0
        %867 = vmatmul.mubr.f32.gmra.mrb[0].mxu0 %v484
        %v868 = vpop.f32.mrb[0].mxu0
        %v869 = vadd.f32 %v708, %v868
        %v870 = vpop.f32.mrb[0].mxu0
        %v871 = vadd.f32 %v710, %v870
        %872 = vmatprep.mubr.f32.mxu0 0.0
        %873 = vmatmul.mubr.f32.gmra.mrb[0].mxu0 %v487
        %v874 = vpop.f32.mrb[0].mxu0
        %v875 = vadd.f32 %v714, %v874
        %v876 = vpop.f32.mrb[0].mxu0
        %v877 = vadd.f32 %v716, %v876
        %878 = vmatprep.mubr.f32.mxu0 0.0
        %879 = vmatmul.mubr.f32.gmra.mrb[0].mxu0 %v490
        %v880 = vpop.f32.mrb[0].mxu0
        %v881 = vadd.f32 %v720, %v880
        %v882 = vpop.f32.mrb[0].mxu0
        %v883 = vadd.f32 %v722, %v882
        %884 = vmatprep.mubr.f32.mxu0 0.0
        %885 = vmatmul.mubr.f32.gmra.mrb[0].mxu0 %v493
        %v886 = vpop.f32.mrb[0].mxu0
        %v887 = vadd.f32 %v726, %v886
        %v888 = vpop.f32.mrb[0].mxu0
        %v889 = vadd.f32 %v728, %v888
        %890 = vmatprep.mubr.f32.mxu0 0.0
        %891 = vmatmul.mubr.f32.gmra.mrb[0].mxu0 %v496
        %v892 = vpop.f32.mrb[0].mxu0
        %v893 = vadd.f32 %v732, %v892
        %v894 = vpop.f32.mrb[0].mxu0
        %v895 = vadd.f32 %v734, %v894
        %896 = vmatprep.mubr.f32.mxu0 0.0
        %897 = vmatmul.mubr.f32.gmra.mrb[0].mxu0 %v499
        %v898 = vpop.f32.mrb[0].mxu0
        %v899 = vadd.f32 %v738, %v898
        %v900 = vpop.f32.mrb[0].mxu0
        %v901 = vadd.f32 %v740, %v900
        %902 = vmatprep.mubr.f32.mxu0 0.0
        %903 = vmatmul.mubr.f32.gmra.mrb[0].mxu0 %v502
        %v904 = vpop.f32.mrb[0].mxu0
        %v905 = vadd.f32 %v744, %v904
        %v906 = vpop.f32.mrb[0].mxu0
        %v907 = vadd.f32 %v746, %v906
        %908 = vmatprep.mubr.f32.mxu0 0.0
        %909 = vmatmul.mubr.f32.gmra.mrb[0].mxu0 %v505
        %v910 = vpop.f32.mrb[0].mxu0
        %v911 = vadd.f32 %v750, %v910
        %v912 = vpop.f32.mrb[0].mxu0
        %v913 = vadd.f32 %v752, %v912
        %914 = vmatprep.mubr.f32.mxu0 0.0
        %915 = vmatmul.mubr.f32.gmra.mrb[0].mxu0 %v508
        %v916 = vpop.f32.mrb[0].mxu0
        %v917 = vadd.f32 %v756, %v916
        %v918 = vpop.f32.mrb[0].mxu0
        %v919 = vadd.f32 %v758, %v918
        %920 = vmatprep.mubr.f32.mxu0 0.0
        %921 = vmatmul.mubr.f32.gmra.mrb[0].mxu0 %v511
        %v922 = vpop.f32.mrb[0].mxu0
        %v923 = vadd.f32 %v762, %v922
        %v924 = vpop.f32.mrb[0].mxu0
        %v925 = vadd.f32 %v764, %v924
        %926 = vmatprep.mubr.f32.mxu0 0.0
        %927 = vmatmul.mubr.f32.gmra.mrb[0].mxu0 %v514
        %v928 = vpop.f32.mrb[0].mxu0
        %v929 = vadd.f32 %v768, %v928
        %v930 = vpop.f32.mrb[0].mxu0
        %v931 = vadd.f32 %v770, %v930
        %932 = vdwg.mxu0
        %v933 = vxor.u32 %v839, 2147483648
        %v934 = vxor.u32 %v841, 2147483648
        %v935 = vxor.u32 %v845, 2147483648
        %v936 = vxor.u32 %v847, 2147483648
        %v937 = vxor.u32 %v851, 2147483648
        %v938 = vxor.u32 %v853, 2147483648
        %v939 = vxor.u32 %v857, 2147483648
        %v940 = vxor.u32 %v859, 2147483648
        %v941 = vmul.f32 %v933, 1.442695
        %v942 = vpow.pop %v941
        %v943 = vmul.f32 %v934, 1.442695
        %v944 = vpow.pop %v943
        %v945 = vmul.f32 %v935, 1.442695
        %v946 = vpow.pop %v945
        %v947 = vmul.f32 %v936, 1.442695
        %v948 = vpow.pop %v947
        %v949 = vmul.f32 %v937, 1.442695
        %v950 = vpow.pop %v949
        %v951 = vmul.f32 %v938, 1.442695
        %v952 = vpow.pop %v951
        %v953 = vmul.f32 %v939, 1.442695
        %v954 = vpow.pop %v953
        %v955 = vmul.f32 %v940, 1.442695
        %v956 = vpow.pop %v955
        %v957 = vadd.f32 %v942, 1.0
        %v958 = vadd.f32 %v944, 1.0
        %v959 = vadd.f32 %v946, 1.0
        %v960 = vadd.f32 %v948, 1.0
        %v961 = vadd.f32 %v950, 1.0
        %v962 = vadd.f32 %v952, 1.0
        %v963 = vadd.f32 %v954, 1.0
        %v964 = vadd.f32 %v956, 1.0
        %v965 = vrcp.pop %v957
        %v966 = vmul.f32 1.0, %v965
        %v967 = vrcp.pop %v958
        %v968 = vmul.f32 1.0, %v967
        %v969 = vrcp.pop %v959
        %v970 = vmul.f32 1.0, %v969
        %v971 = vrcp.pop %v960
        %v972 = vmul.f32 1.0, %v971
        %v973 = vrcp.pop %v961
        %v974 = vmul.f32 1.0, %v973
        %v975 = vrcp.pop %v962
        %v976 = vmul.f32 1.0, %v975
        %v977 = vrcp.pop %v963
        %v978 = vmul.f32 1.0, %v977
        %v979 = vrcp.pop %v964
        %v980 = vmul.f32 1.0, %v979
        %v981 = vxor.u32 %v863, 2147483648
        %v982 = vxor.u32 %v865, 2147483648
        %v983 = vxor.u32 %v869, 2147483648
        %v984 = vxor.u32 %v871, 2147483648
        %v985 = vxor.u32 %v875, 2147483648
        %v986 = vxor.u32 %v877, 2147483648
        %v987 = vxor.u32 %v881, 2147483648
        %v988 = vxor.u32 %v883, 2147483648
        %v989 = vmul.f32 %v981, 1.442695
        %v990 = vpow.pop %v989
        %v991 = vmul.f32 %v982, 1.442695
        %v992 = vpow.pop %v991
        %v993 = vmul.f32 %v983, 1.442695
        %v994 = vpow.pop %v993
        %v995 = vmul.f32 %v984, 1.442695
        %v996 = vpow.pop %v995
        %v997 = vmul.f32 %v985, 1.442695
        %v998 = vpow.pop %v997
        %v999 = vmul.f32 %v986, 1.442695
        %v1000 = vpow.pop %v999
        %v1001 = vmul.f32 %v987, 1.442695
        %v1002 = vpow.pop %v1001
        %v1003 = vmul.f32 %v988, 1.442695
        %v1004 = vpow.pop %v1003
        %v1005 = vadd.f32 %v990, 1.0
        %v1006 = vadd.f32 %v992, 1.0
        %v1007 = vadd.f32 %v994, 1.0
        %v1008 = vadd.f32 %v996, 1.0
        %v1009 = vadd.f32 %v998, 1.0
        %v1010 = vadd.f32 %v1000, 1.0
        %v1011 = vadd.f32 %v1002, 1.0
        %v1012 = vadd.f32 %v1004, 1.0
        %v1013 = vrcp.pop %v1005
        %v1014 = vmul.f32 1.0, %v1013
        %v1015 = vrcp.pop %v1006
        %v1016 = vmul.f32 1.0, %v1015
        %v1017 = vrcp.pop %v1007
        %v1018 = vmul.f32 1.0, %v1017
        %v1019 = vrcp.pop %v1008
        %v1020 = vmul.f32 1.0, %v1019
        %v1021 = vrcp.pop %v1009
        %v1022 = vmul.f32 1.0, %v1021
        %v1023 = vrcp.pop %v1010
        %v1024 = vmul.f32 1.0, %v1023
        %v1025 = vrcp.pop %v1011
        %v1026 = vmul.f32 1.0, %v1025
        %v1027 = vrcp.pop %v1012
        %v1028 = vmul.f32 1.0, %v1027
        %v1029 = vtanh.pop %v887
        %v1030 = vtanh.pop %v889
        %v1031 = vtanh.pop %v893
        %v1032 = vtanh.pop %v895
        %v1033 = vtanh.pop %v899
        %v1034 = vtanh.pop %v901
        %v1035 = vtanh.pop %v905
        %v1036 = vtanh.pop %v907
        %v1037 = vxor.u32 %v911, 2147483648
        %v1038 = vxor.u32 %v913, 2147483648
        %v1039 = vxor.u32 %v917, 2147483648
        %v1040 = vxor.u32 %v919, 2147483648
        %v1041 = vxor.u32 %v923, 2147483648
        %v1042 = vxor.u32 %v925, 2147483648
        %v1043 = vxor.u32 %v929, 2147483648
        %v1044 = vxor.u32 %v931, 2147483648
        %v1045 = vmul.f32 %v1037, 1.442695
        %v1046 = vpow.pop %v1045
        %v1047 = vmul.f32 %v1038, 1.442695
        %v1048 = vpow.pop %v1047
        %v1049 = vmul.f32 %v1039, 1.442695
        %v1050 = vpow.pop %v1049
        %v1051 = vmul.f32 %v1040, 1.442695
        %v1052 = vpow.pop %v1051
        %v1053 = vmul.f32 %v1041, 1.442695
        %v1054 = vpow.pop %v1053
        %v1055 = vmul.f32 %v1042, 1.442695
        %v1056 = vpow.pop %v1055
        %v1057 = vmul.f32 %v1043, 1.442695
        %v1058 = vpow.pop %v1057
        %v1059 = vmul.f32 %v1044, 1.442695
        %v1060 = vpow.pop %v1059
        %v1061 = vadd.f32 %v1046, 1.0
        %v1062 = vadd.f32 %v1048, 1.0
        %v1063 = vadd.f32 %v1050, 1.0
        %v1064 = vadd.f32 %v1052, 1.0
        %v1065 = vadd.f32 %v1054, 1.0
        %v1066 = vadd.f32 %v1056, 1.0
        %v1067 = vadd.f32 %v1058, 1.0
        %v1068 = vadd.f32 %v1060, 1.0
        %v1069 = vrcp.pop %v1061
        %v1070 = vmul.f32 1.0, %v1069
        %v1071 = vrcp.pop %v1062
        %v1072 = vmul.f32 1.0, %v1071
        %v1073 = vrcp.pop %v1063
        %v1074 = vmul.f32 1.0, %v1073
        %v1075 = vrcp.pop %v1064
        %v1076 = vmul.f32 1.0, %v1075
        %v1077 = vrcp.pop %v1065
        %v1078 = vmul.f32 1.0, %v1077
        %v1079 = vrcp.pop %v1066
        %v1080 = vmul.f32 1.0, %v1079
        %v1081 = vrcp.pop %v1067
        %v1082 = vmul.f32 1.0, %v1081
        %v1083 = vrcp.pop %v1068
        %v1084 = vmul.f32 1.0, %v1083
        %v1085 = vld [vmem:[%s433] sm:$0xff]
        %v1086 = vld [vmem:[%s433 + $0x8] sm:$0xff]
        %v1087 = vld [vmem:[%s433 + $0x10] sm:$0xff]
        %v1088 = vld [vmem:[%s433 + $0x18] sm:$0xff]
        %v1089 = vld [vmem:[%s433 + $0x20] sm:$0xff]
        %v1090 = vld [vmem:[%s433 + $0x28] sm:$0xff]
        %v1091 = vld [vmem:[%s433 + $0x30] sm:$0xff]
        %v1092 = vld [vmem:[%s433 + $0x38] sm:$0xff]
        %v1093 = vmul.f32 %v1014, %v1085
        %v1094 = vmul.f32 %v1016, %v1086
        %v1095 = vmul.f32 %v1018, %v1087
        %v1096 = vmul.f32 %v1020, %v1088
        %v1097 = vmul.f32 %v1022, %v1089
        %v1098 = vmul.f32 %v1024, %v1090
        %v1099 = vmul.f32 %v1026, %v1091
        %v1100 = vmul.f32 %v1028, %v1092
        %v1101 = vmul.f32 %v966, %v1029
        %v1102 = vmul.f32 %v968, %v1030
        %v1103 = vmul.f32 %v970, %v1031
        %v1104 = vmul.f32 %v972, %v1032
        %v1105 = vmul.f32 %v974, %v1033
        %v1106 = vmul.f32 %v976, %v1034
        %v1107 = vmul.f32 %v978, %v1035
        %v1108 = vmul.f32 %v980, %v1036
        %v1109 = vadd.f32 %v1093, %v1101
        %v1110 = vadd.f32 %v1094, %v1102
        %v1111 = vadd.f32 %v1095, %v1103
        %v1112 = vadd.f32 %v1096, %v1104
        %v1113 = vadd.f32 %v1097, %v1105
        %v1114 = vadd.f32 %v1098, %v1106
        %v1115 = vadd.f32 %v1099, %v1107
        %v1116 = vadd.f32 %v1100, %v1108
        %v1117 = vtanh.pop %v1109
        %v1118 = vtanh.pop %v1110
        %v1119 = vtanh.pop %v1111
        %v1120 = vtanh.pop %v1112
        %v1121 = vtanh.pop %v1113
        %v1122 = vtanh.pop %v1114
        %v1123 = vtanh.pop %v1115
        %v1124 = vtanh.pop %v1116
        %v1125 = vmul.f32 %v1070, %v1117
        %v1126 = vmul.f32 %v1072, %v1118
        %v1127 = vmul.f32 %v1074, %v1119
        %v1128 = vmul.f32 %v1076, %v1120
        %v1129 = vmul.f32 %v1078, %v1121
        %v1130 = vmul.f32 %v1080, %v1122
        %v1131 = vmul.f32 %v1082, %v1123
        %v1132 = vmul.f32 %v1084, %v1124
        %1133 = vst [vmem:[%s462] sm:$0xff] %v1109
        %1134 = vst [vmem:[%s462 + $0x8] sm:$0xff] %v1110
        %1135 = vst [vmem:[%s462 + $0x10] sm:$0xff] %v1111
        %1136 = vst [vmem:[%s462 + $0x18] sm:$0xff] %v1112
        %1137 = vst [vmem:[%s462 + $0x20] sm:$0xff] %v1113
        %1138 = vst [vmem:[%s462 + $0x28] sm:$0xff] %v1114
        %1139 = vst [vmem:[%s462 + $0x30] sm:$0xff] %v1115
        %1140 = vst [vmem:[%s462 + $0x38] sm:$0xff] %v1116
        %1141 = vst [vmem:[%s456] sm:$0xff] %v1125
        %1142 = vst [vmem:[%s456 + $0x8] sm:$0xff] %v1126
        %1143 = vst [vmem:[%s456 + $0x10] sm:$0xff] %v1127
        %1144 = vst [vmem:[%s456 + $0x18] sm:$0xff] %v1128
        %1145 = vst [vmem:[%s456 + $0x20] sm:$0xff] %v1129
        %1146 = vst [vmem:[%s456 + $0x28] sm:$0xff] %v1130
        %1147 = vst [vmem:[%s456 + $0x30] sm:$0xff] %v1131
        %1148 = vst [vmem:[%s456 + $0x38] sm:$0xff] %v1132
        %s1149 = sand.u32 %s97, 1
        %s1150 = sand.u32 %s97, 1
        %s1151 = smul.addr %s1150, 64
        %s1152 = scalar_lea.vmem [#allocation4], %s1151
        %s1153 = sand.u32 %s123, 1
        %s1154 = sand.u32 %s123, 1
        %s1155 = smul.addr %s1154, 64
        %s1156 = scalar_lea.vmem [#allocation5], %s1155
        // Predicated region
        $region79: #{conv_lstm_cell.1} parent=69 // pred_check
          %p1157 = pneg %p107
        $region80: #{conv_lstm_cell.1} parent=69 // pred_check_branch
          %1159 = sbr.rel (%p1157) target = $region82
        $region81: #{conv_lstm_cell.1} parent=69 // pred_region
          %s1160 = smul.u32 2, %s16
          %s1161 = smul.addr %s1160, 8
          %s1162 = scalar_lea.vmem %s3, %s1161
          // Predicated region
          $region83: #{conv_lstm_cell.1} parent=81 // pred_check
            _
          $region84: #{conv_lstm_cell.1} parent=81 // pred_check_branch
            %1164 = sbr.rel (0) target = $region86
          $region85: #{conv_lstm_cell.1} parent=81 // pred_region
            // Predicated region
            $region87: #{conv_lstm_cell.1} parent=85 // pred_check
              _
            $region88: #{conv_lstm_cell.1} parent=85 // pred_check_branch
              %1166 = sbr.rel (0) target = $region90
            $region89: #{conv_lstm_cell.1} parent=85 // pred_region
              loop: start=0, step=1, limit=1
              $region91: #{conv_lstm_cell.1} parent=89 // loop_pre_header
                _
              $region92: #{conv_lstm_cell.1} parent=89 // loop_header
                %s1168 = sphi 0, %s1172
                %p1169 = scmp.ge.s32.totalorder %s1168, 1
                %s1173 = sphi %s1152, %s1152
                %s1174 = sphi %s1162, %s1162
              $region93: #{conv_lstm_cell.1} parent=89 // loop_header_branch
                %1171 = sbr.rel (%p1169) target = $region97
              $region94: #{conv_lstm_cell.1} parent=89 // loop_body
                %v1175 = vld [vmem:[%s1173] sm:$0xff]
                %1176 = vst [vmem:[%s1174] sm:$0xff] %v1175
                %v1177 = vld [vmem:[%s1173 + $0x8] sm:$0xff]
                %1178 = vst [vmem:[%s1174 + $0x8] sm:$0xff] %v1177
                %v1179 = vld [vmem:[%s1173 + $0x10] sm:$0xff]
                %1180 = vst [vmem:[%s1174 + $0x20] sm:$0xff] %v1179
                %v1181 = vld [vmem:[%s1173 + $0x18] sm:$0xff]
                %1182 = vst [vmem:[%s1174 + $0x28] sm:$0xff] %v1181
                %v1183 = vld [vmem:[%s1173 + $0x20] sm:$0xff]
                %1184 = vst [vmem:[%s1174 + $0x40] sm:$0xff] %v1183
                %v1185 = vld [vmem:[%s1173 + $0x28] sm:$0xff]
                %1186 = vst [vmem:[%s1174 + $0x48] sm:$0xff] %v1185
                %v1187 = vld [vmem:[%s1173 + $0x30] sm:$0xff]
                %1188 = vst [vmem:[%s1174 + $0x60] sm:$0xff] %v1187
                %v1189 = vld [vmem:[%s1173 + $0x38] sm:$0xff]
                %1190 = vst [vmem:[%s1174 + $0x68] sm:$0xff] %v1189
              $region95: #{conv_lstm_cell.1} parent=89 // loop_footer
                %s1172 = sadd.s32 1, %s1168
              $region96: #{conv_lstm_cell.1} parent=89 // loop_footer_branch
                %1167 = sbr.rel target = $region92
              $region97: #{conv_lstm_cell.1} parent=89 // loop_exit
                _
            $region90: #{conv_lstm_cell.1} parent=85 // pred_fallthru
              _
            // Predicated region
            $region98: #{conv_lstm_cell.1} parent=85 // pred_check
              _
            $region99: #{conv_lstm_cell.1} parent=85 // pred_check_branch
              %1192 = sbr.rel target = $region101
            $region100: #{conv_lstm_cell.1} parent=85 // pred_region
              _
            $region101: #{conv_lstm_cell.1} parent=85 // pred_fallthru
              _
          $region86: #{conv_lstm_cell.1} parent=81 // pred_fallthru
            _
          %1193 = vnop
        $region82: #{conv_lstm_cell.1} parent=69 // pred_fallthru
          _
        // Predicated region
        $region102: #{conv_lstm_cell.1} parent=69 // pred_check
          %p1194 = pneg %p133
        $region103: #{conv_lstm_cell.1} parent=69 // pred_check_branch
          %1196 = sbr.rel (%p1194) target = $region105
        $region104: #{conv_lstm_cell.1} parent=69 // pred_region
          %s1197 = smul.u32 2, %s16
          %s1198 = smul.addr %s1197, 8
          %s1199 = scalar_lea.vmem %s4, %s1198
          // Predicated region
          $region106: #{conv_lstm_cell.1} parent=104 // pred_check
            _
          $region107: #{conv_lstm_cell.1} parent=104 // pred_check_branch
            %1201 = sbr.rel (0) target = $region109
          $region108: #{conv_lstm_cell.1} parent=104 // pred_region
            // Predicated region
            $region110: #{conv_lstm_cell.1} parent=108 // pred_check
              _
            $region111: #{conv_lstm_cell.1} parent=108 // pred_check_branch
              %1203 = sbr.rel (0) target = $region113
            $region112: #{conv_lstm_cell.1} parent=108 // pred_region
              loop: start=0, step=1, limit=1
              $region114: #{conv_lstm_cell.1} parent=112 // loop_pre_header
                _
              $region115: #{conv_lstm_cell.1} parent=112 // loop_header
                %s1205 = sphi 0, %s1209
                %p1206 = scmp.ge.s32.totalorder %s1205, 1
                %s1210 = sphi %s1156, %s1156
                %s1211 = sphi %s1199, %s1199
              $region116: #{conv_lstm_cell.1} parent=112 // loop_header_branch
                %1208 = sbr.rel (%p1206) target = $region120
              $region117: #{conv_lstm_cell.1} parent=112 // loop_body
                %v1212 = vld [vmem:[%s1210] sm:$0xff]
                %1213 = vst [vmem:[%s1211] sm:$0xff] %v1212
                %v1214 = vld [vmem:[%s1210 + $0x8] sm:$0xff]
                %1215 = vst [vmem:[%s1211 + $0x8] sm:$0xff] %v1214
                %v1216 = vld [vmem:[%s1210 + $0x10] sm:$0xff]
                %1217 = vst [vmem:[%s1211 + $0x20] sm:$0xff] %v1216
                %v1218 = vld [vmem:[%s1210 + $0x18] sm:$0xff]
                %1219 = vst [vmem:[%s1211 + $0x28] sm:$0xff] %v1218
                %v1220 = vld [vmem:[%s1210 + $0x20] sm:$0xff]
                %1221 = vst [vmem:[%s1211 + $0x40] sm:$0xff] %v1220
                %v1222 = vld [vmem:[%s1210 + $0x28] sm:$0xff]
                %1223 = vst [vmem:[%s1211 + $0x48] sm:$0xff] %v1222
                %v1224 = vld [vmem:[%s1210 + $0x30] sm:$0xff]
                %1225 = vst [vmem:[%s1211 + $0x60] sm:$0xff] %v1224
                %v1226 = vld [vmem:[%s1210 + $0x38] sm:$0xff]
                %1227 = vst [vmem:[%s1211 + $0x68] sm:$0xff] %v1226
              $region118: #{conv_lstm_cell.1} parent=112 // loop_footer
                %s1209 = sadd.s32 1, %s1205
              $region119: #{conv_lstm_cell.1} parent=112 // loop_footer_branch
                %1204 = sbr.rel target = $region115
              $region120: #{conv_lstm_cell.1} parent=112 // loop_exit
                _
            $region113: #{conv_lstm_cell.1} parent=108 // pred_fallthru
              _
            // Predicated region
            $region121: #{conv_lstm_cell.1} parent=108 // pred_check
              _
            $region122: #{conv_lstm_cell.1} parent=108 // pred_check_branch
              %1229 = sbr.rel target = $region124
            $region123: #{conv_lstm_cell.1} parent=108 // pred_region
              _
            $region124: #{conv_lstm_cell.1} parent=108 // pred_fallthru
              _
          $region109: #{conv_lstm_cell.1} parent=104 // pred_fallthru
            _
          %1230 = vnop
        $region105: #{conv_lstm_cell.1} parent=69 // pred_fallthru
          _
      $region70: #{conv_lstm_cell.1} parent=5 // pred_fallthru
        _
      %p1231 = scmp.le.s32.totalorder 2, %s11
      // Predicated region
      $region125: #{conv_lstm_cell.1} parent=5 // pred_check
        %p1232 = pneg %p1231
      $region126: #{conv_lstm_cell.1} parent=5 // pred_check_branch
        %1234 = sbr.rel (%p1232) target = $region128
      $region127: #{conv_lstm_cell.1} parent=5 // pred_region
        %s1235 = ssub.s32 %s11, 2
        // Predicated region
        $region129: #{conv_lstm_cell.1} parent=127 // pred_check
          %p1236 = pneg %p113
        $region130: #{conv_lstm_cell.1} parent=127 // pred_check_branch
          %1238 = sbr.rel (%p1236) target = $region132
        $region131: #{conv_lstm_cell.1} parent=127 // pred_region
          %s1239 = sand.u32 %s98, 1
          %s1240 = sand.u32 %s98, 1
          %s1241 = smul.addr %s1240, 64
          %s1242 = scalar_lea.vmem [#allocation4], %s1241
        $region132: #{conv_lstm_cell.1} parent=127 // pred_fallthru
          _
        // Predicated region
        $region133: #{conv_lstm_cell.1} parent=127 // pred_check
          %p1243 = pneg %p139
        $region134: #{conv_lstm_cell.1} parent=127 // pred_check_branch
          %1245 = sbr.rel (%p1243) target = $region136
        $region135: #{conv_lstm_cell.1} parent=127 // pred_region
          %s1246 = sand.u32 %s124, 1
          %s1247 = sand.u32 %s124, 1
          %s1248 = smul.addr %s1247, 64
          %s1249 = scalar_lea.vmem [#allocation5], %s1248
        $region136: #{conv_lstm_cell.1} parent=127 // pred_fallthru
          _
      $region128: #{conv_lstm_cell.1} parent=5 // pred_fallthru
        _
    $region6: #{conv_lstm_cell.1} parent=1 // loop_footer
      %s15 = sadd.s32 1, %s11
    $region7: #{conv_lstm_cell.1} parent=1 // loop_footer_branch
      %10 = sbr.rel target = $region3
    $region8: #{conv_lstm_cell.1} parent=1 // loop_exit
      _

</llo_original>
